<compile_context>
chip_gen: v6e
topology: v6e:2x2x1
jax: 0.10.0
libtpu: 0.0.40
codegen_flags: <defaults>
</compile_context>

<pallas_src>
import functools

import jax
import jax.numpy as jnp
from jax.experimental import pallas as pl
from jax.experimental.pallas import tpu as pltpu


def _round_up(x, m):
    return (x + m - 1) // m * m


def _chunk_len(t, max_chunk=128):
    """Largest divisor of t that is <= max_chunk (so chunks tile T exactly)."""
    tc = min(t, max_chunk)
    while t % tc:
        tc -= 1
    return tc


# ----------------------------------------------------------------------------
# Per-layer GRU kernel body; grid axis 0 iterates over layers sequentially.
# ----------------------------------------------------------------------------
def _encoder_gru_kernel(x_ref, wih_ref, whh_ref, bgi_ref, bhn_ref,
                        out_ref, hidden_ref, gi_buf,
                        *, seq_len, chunk, batch_pad, hidden_pad, in_pad,
                        unroll):
    T, Tc, Bp, Hp, Kp = seq_len, chunk, batch_pad, hidden_pad, in_pad
    layer = pl.program_id(0)
    mm_dtype = whh_ref.dtype                                  # matmul operand dtype

    w_ih = wih_ref[0]                                         # (Kp, 3Hp)
    w_ih_h = w_ih if Kp == Hp else w_ih[:Hp, :]               # rows used by layers >= 1
    w_hh = whh_ref[0]                                         # (Hp, 3Hp)
    b_gi = bgi_ref[0]                                         # (1, 3Hp)  b_ih + b_hh[r,z]
    bhn_b = jnp.broadcast_to(bhn_ref[0], (Bp, Hp))            # hoisted broadcast of b_hn

    h = jnp.zeros((Bp, Hp), jnp.float32)                      # matches torch.zeros h0
    for c in range(T // Tc):                                  # static chunk loop
        t0 = c * Tc

        # ---- Hoisted input projection for this time chunk: one MXU matmul ----
        @pl.when(layer == 0)
        def _():
            rows = x_ref[pl.ds(t0, Tc)].reshape(Tc * Bp, Kp).astype(mm_dtype)
            gi = jnp.dot(rows, w_ih, preferred_element_type=jnp.float32) + b_gi
            gi_buf[...] = gi.reshape(Tc, Bp, 3 * Hp)

        @pl.when(layer != 0)
        def _():
            rows = out_ref[pl.ds(t0, Tc)].reshape(Tc * Bp, Hp).astype(mm_dtype)
            gi = jnp.dot(rows, w_ih_h, preferred_element_type=jnp.float32) + b_gi
            gi_buf[...] = gi.reshape(Tc, Bp, 3 * Hp)

        # ---- Serial recurrence over this chunk ----
        def step(i, h_prev):
            gi_t = gi_buf[i]                                  # (Bp, 3Hp)
            gh = jnp.dot(h_prev.astype(mm_dtype), w_hh,
                         preferred_element_type=jnp.float32)  # (Bp, 3Hp)
            rz = jax.nn.sigmoid(gi_t[:, :2 * Hp] + gh[:, :2 * Hp])  # fused r|z
            r, z = rz[:, :Hp], rz[:, Hp:]
            n = jnp.tanh(gi_t[:, 2 * Hp:] + r * (gh[:, 2 * Hp:] + bhn_b))
            h_new = n + z * (h_prev - n)                      # == (1-z)*n + z*h_prev
            out_ref[t0 + i] = h_new                           # layer output, in place
            return h_new

        h = jax.lax.fori_loop(0, Tc, step, h, unroll=unroll)

    hidden_ref[0] = h                                         # final hidden of this layer


# ----------------------------------------------------------------------------
# Host wrapper: pad/pack params, call the kernel, unpad results.
# ----------------------------------------------------------------------------
def encoder_forward(x, params, *, matmul_dtype=jnp.float32, gi_chunk=128):
    """x: (B, T, F) float32. Returns out (B, T, H), hidden (num_layers, B, H)."""
    B, T, F = x.shape
    H = params[0][1].shape[1]                  # w_hh: (3H, H)
    L = len(params)
    Hp = _round_up(max(H, 1), 128)             # each gate spans exactly Hp lanes
    Fp = _round_up(max(F, 1), 128)
    Kp = max(Fp, Hp)                           # input-row padding (handles F > H too)
    Bp = _round_up(max(B, 1), 8)               # sublane-pad batch
    Tc = _chunk_len(T, gi_chunk)               # gi computed Tc timesteps at a time
    unroll = True if Tc <= 16 else 8           # bounded unroll for long chunks

    # Pack / pad parameters, gate-blocked so each gate spans exactly Hp lanes.
    wih_l, whh_l, bgi_l, bhn_l = [], [], [], []
    for (w_ih, w_hh, b_ih, b_hh) in params:
        in_size = w_ih.shape[1]
        w_ih3 = jnp.pad(w_ih.astype(jnp.float32).reshape(3, H, in_size),
                        ((0, 0), (0, Hp - H), (0, Kp - in_size)))
        w_hh3 = jnp.pad(w_hh.astype(jnp.float32).reshape(3, H, H),
                        ((0, 0), (0, Hp - H), (0, Hp - H)))
        wih_l.append(jnp.transpose(w_ih3, (2, 0, 1)).reshape(Kp, 3 * Hp))   # W_ih^T
        whh_l.append(jnp.transpose(w_hh3, (2, 0, 1)).reshape(Hp, 3 * Hp))   # W_hh^T
        b_ih3 = jnp.pad(b_ih.astype(jnp.float32).reshape(3, H), ((0, 0), (0, Hp - H)))
        b_hh3 = jnp.pad(b_hh.astype(jnp.float32).reshape(3, H), ((0, 0), (0, Hp - H)))
        bgi_l.append((b_ih3 + b_hh3.at[2].set(0.0)).reshape(1, 3 * Hp))     # folded bias
        bhn_l.append(b_hh3[2].reshape(1, Hp))                               # b_hn only
    wih_all = jnp.stack(wih_l).astype(matmul_dtype)    # (L, Kp, 3Hp)
    whh_all = jnp.stack(whh_l).astype(matmul_dtype)    # (L, Hp, 3Hp)
    bgi_all = jnp.stack(bgi_l)                         # (L, 1, 3Hp), f32
    bhn_all = jnp.stack(bhn_l)                         # (L, 1, Hp),  f32

    # Time-major, zero-padded input: (T, Bp, Kp).
    x_tm = jnp.transpose(x.astype(jnp.float32), (1, 0, 2))
    x_pad = jnp.pad(x_tm, ((0, 0), (0, Bp - B), (0, Kp - F)))

    kernel = functools.partial(_encoder_gru_kernel, seq_len=T, chunk=Tc,
                               batch_pad=Bp, hidden_pad=Hp, in_pad=Kp,
                               unroll=unroll)

    # --- VMEM budget (explicit, per review): inputs double-buffered. ---
    w_item = jnp.dtype(matmul_dtype).itemsize
    bytes_x = T * Bp * Kp * 4
    bytes_out = T * Bp * Hp * 4
    bytes_w = (Kp * 3 * Hp + Hp * 3 * Hp) * w_item        # one layer's weight blocks
    bytes_b = (3 * Hp + Hp) * 4
    bytes_gi = Tc * Bp * 3 * Hp * 4
    bytes_hid = Bp * Hp * 4
    vmem_bytes = (2 * bytes_x + 2 * bytes_out + 2 * (bytes_w + bytes_b)
                  + bytes_gi + 2 * bytes_hid + (1 << 20))
    vmem_limit = int(min(max(vmem_bytes, 16 << 20), 128 << 20))

    cost = pl.CostEstimate(
        flops=int(2 * L * T * Bp * 3 * Hp * (Kp + Hp)),
        transcendentals=int(L * T * Bp * 3 * Hp),
        bytes_accessed=int(bytes_x + bytes_out + L * (bytes_w + bytes_b + bytes_hid)),
    )

    grid_spec = pltpu.PrefetchScalarGridSpec(
        num_scalar_prefetch=0,
        grid=(L,),
        in_specs=[
            pl.BlockSpec((T, Bp, Kp), lambda l: (0, 0, 0)),       # x (loaded once)
            pl.BlockSpec((1, Kp, 3 * Hp), lambda l: (l, 0, 0)),   # W_ih^T per layer
            pl.BlockSpec((1, Hp, 3 * Hp), lambda l: (l, 0, 0)),   # W_hh^T per layer
            pl.BlockSpec((1, 1, 3 * Hp), lambda l: (l, 0, 0)),    # folded biases
            pl.BlockSpec((1, 1, Hp), lambda l: (l, 0, 0)),        # b_hn
        ],
        out_specs=(
            pl.BlockSpec((T, Bp, Hp), lambda l: (0, 0, 0)),       # sequence (resident)
            pl.BlockSpec((1, Bp, Hp), lambda l: (l, 0, 0)),       # final hidden / layer
        ),
        scratch_shapes=[pltpu.VMEM((Tc, Bp, 3 * Hp), jnp.float32)],  # gi chunk buffer
    )

    out_p, hidden_p = pl.pallas_call(
        kernel,
        out_shape=(
            jax.ShapeDtypeStruct((T, Bp, Hp), jnp.float32),
            jax.ShapeDtypeStruct((L, Bp, Hp), jnp.float32),
        ),
        grid_spec=grid_spec,
        compiler_params=pltpu.CompilerParams(
            dimension_semantics=("arbitrary",),       # layers are sequential
            vmem_limit_bytes=vmem_limit),
        cost_estimate=cost,
    )(x_pad, wih_all, whh_all, bgi_all, bhn_all)

    out = jnp.transpose(out_p[:, :B, :H], (1, 0, 2))     # (B, T, H)
    hidden = hidden_p[:, :B, :H]                         # (L, B, H)
    return out, hidden


# ----------------------------------------------------------------------------
# Deterministic parameter init mirroring Encoder.__init__ shapes:
#   weight_ih_l{k}: (3H, in)  xavier_uniform ; weight_hh_l{k}: (3H, H) orthogonal
#   bias_ih / bias_hh: (3H,) zeros
# ----------------------------------------------------------------------------
def init_encoder_params(key, feature_size, hidden_size, num_layers):
    params = []
    for layer in range(num_layers):
        in_size = feature_size if layer == 0 else hidden_size
        key, k1, k2 = jax.random.split(key, 3)
        limit = (6.0 / (3 * hidden_size + in_size)) ** 0.5
        w_ih = jax.random.uniform(k1, (3 * hidden_size, in_size),
                                  jnp.float32, -limit, limit)
        w_hh = jax.nn.initializers.orthogonal()(
            k2, (3 * hidden_size, hidden_size), jnp.float32)
        b_ih = jnp.zeros((3 * hidden_size,), jnp.float32)
        b_hh = jnp.zeros((3 * hidden_size,), jnp.float32)
        params.append((w_ih, w_hh, b_ih, b_hh))
    return params


# ----------------------------------------------------------------------------
# Pure-JAX reference (lax.scan) for correctness check.
# ----------------------------------------------------------------------------
def _gru_layer_ref(x_tm, w_ih, w_hh, b_ih, b_hh):
    H = w_hh.shape[1]
    B = x_tm.shape[1]

    def step(h, x_t):
        gi = x_t @ w_ih.T + b_ih
        gh = h @ w_hh.T + b_hh
        r = jax.nn.sigmoid(gi[:, :H] + gh[:, :H])
        z = jax.nn.sigmoid(gi[:, H:2 * H] + gh[:, H:2 * H])
        n = jnp.tanh(gi[:, 2 * H:] + r * gh[:, 2 * H:])
        h_new = (1.0 - z) * n + z * h
        return h_new, h_new

    h0 = jnp.zeros((B, H), jnp.float32)
    h_last, out = jax.lax.scan(step, h0, x_tm)
    return out, h_last


def encoder_forward_ref(x, params):
    x_tm = jnp.transpose(x, (1, 0, 2)).astype(jnp.float32)
    hiddens = []
    layer_in = x_tm
    for (w_ih, w_hh, b_ih, b_hh) in params:
        layer_in, h_last = _gru_layer_ref(layer_in, w_ih, w_hh, b_ih, b_hh)
        hiddens.append(h_last)
    return jnp.transpose(layer_in, (1, 0, 2)), jnp.stack(hiddens, axis=0)


if __name__ == "__main__":
    # Small shapes consistent with the module: batch=2, seq=8, feature=4, hidden=32
    B, T, FEAT, H, NUM_LAYERS = 2, 8, 4, 32, 2

    key = jax.random.PRNGKey(0)
    key, kx, kp = jax.random.split(key, 3)
    x = jax.random.normal(kx, (B, T, FEAT), jnp.float32)
    params = init_encoder_params(kp, FEAT, H, NUM_LAYERS)

    out_ref_jax, hidden_ref_jax = encoder_forward_ref(x, params)

    # f32 matmul path (exact check vs the pure-JAX reference).
    out, hidden = encoder_forward(x, params, matmul_dtype=jnp.float32)
    jax.block_until_ready((out, hidden))
    assert out.shape == (B, T, H)
    assert hidden.shape == (NUM_LAYERS, B, H)
    assert jnp.allclose(out, out_ref_jax, atol=1e-4, rtol=1e-4)
    assert jnp.allclose(hidden, hidden_ref_jax, atol=1e-4, rtol=1e-4)

    # bf16 matmul operands (f32 accumulation + f32 state) — MXU-native path
    # recommended for v6e/v7x; validated at a looser tolerance.
    out_bf, hidden_bf = encoder_forward(x, params, matmul_dtype=jnp.bfloat16)
    jax.block_until_ready((out_bf, hidden_bf))
    assert jnp.allclose(out_bf, out_ref_jax, atol=5e-2, rtol=5e-2)
    assert jnp.allclose(hidden_bf, hidden_ref_jax, atol=5e-2, rtol=5e-2)

    print("KERNEL_OK")
</pallas_src>

<mosaic_0001>
module attributes {stable_mosaic.version = 11 : i64} {
  func.func @_encoder_gru_kernel(%arg0: i32, %arg1: memref<8x8x128xf32, #tpu.memory_space<vmem>>, %arg2: memref<1x128x384xf32, #tpu.memory_space<vmem>>, %arg3: memref<1x128x384xf32, #tpu.memory_space<vmem>>, %arg4: memref<1x1x384xf32, #tpu.memory_space<vmem>>, %arg5: memref<1x1x128xf32, #tpu.memory_space<vmem>>, %arg6: memref<8x8x128xf32, #tpu.memory_space<vmem>>, %arg7: memref<1x8x128xf32, #tpu.memory_space<vmem>>, %arg8: memref<8x8x384xf32, #tpu.memory_space<vmem>>) attributes {dimension_semantics = [#tpu.dimension_semantics<arbitrary>], iteration_bounds = array<i64: 2>, scalar_prefetch = 0 : i64, scratch_operands = 1 : i64, tpu.core_type = #tpu.core_type<tc>, window_params = [{pipeline_mode = #tpu.pipeline_mode<synchronous>, transform_indices = @transform_0, window_bounds = array<i64: 8, 8, 128>}, {transform_indices = @transform_1, window_bounds = array<i64: 1, 128, 384>}, {transform_indices = @transform_2, window_bounds = array<i64: 1, 128, 384>}, {transform_indices = @transform_3, window_bounds = array<i64: 1, 1, 384>}, {transform_indices = @transform_4, window_bounds = array<i64: 1, 1, 128>}, {pipeline_mode = #tpu.pipeline_mode<synchronous>, transform_indices = @transform_5, window_bounds = array<i64: 8, 8, 128>}, {transform_indices = @transform_6, window_bounds = array<i64: 1, 8, 128>}]} {
    %c0 = arith.constant 0 : index
    %c0_0 = arith.constant 0 : index
    %c0_1 = arith.constant 0 : index
    %0 = vector.load %arg2[%c0, %c0_0, %c0_1] : memref<1x128x384xf32, #tpu.memory_space<vmem>>, vector<1x128x384xf32>
    %1 = vector.shape_cast %0 : vector<1x128x384xf32> to vector<128x384xf32>
    %c0_2 = arith.constant 0 : index
    %c0_3 = arith.constant 0 : index
    %c0_4 = arith.constant 0 : index
    %2 = vector.load %arg3[%c0_2, %c0_3, %c0_4] : memref<1x128x384xf32, #tpu.memory_space<vmem>>, vector<1x128x384xf32>
    %3 = vector.shape_cast %2 : vector<1x128x384xf32> to vector<128x384xf32>
    %c0_5 = arith.constant 0 : index
    %c0_6 = arith.constant 0 : index
    %c0_7 = arith.constant 0 : index
    %4 = vector.load %arg4[%c0_5, %c0_6, %c0_7] : memref<1x1x384xf32, #tpu.memory_space<vmem>>, vector<1x1x384xf32>
    %5 = vector.shape_cast %4 : vector<1x1x384xf32> to vector<1x384xf32>
    %c0_8 = arith.constant 0 : index
    %c0_9 = arith.constant 0 : index
    %c0_10 = arith.constant 0 : index
    %6 = vector.load %arg5[%c0_8, %c0_9, %c0_10] : memref<1x1x128xf32, #tpu.memory_space<vmem>>, vector<1x1x128xf32>
    %7 = vector.shape_cast %6 : vector<1x1x128xf32> to vector<1x128xf32>
    %8 = vector.shape_cast %7 : vector<1x128xf32> to vector<1x128xf32>
    %9 = vector.broadcast %8 : vector<1x128xf32> to vector<8x128xf32>
    %cst = arith.constant 0.000000e+00 : f32
    %10 = vector.broadcast %cst : f32 to vector<8x128xf32>
    %c0_i32 = arith.constant 0 : i32
    %11 = arith.cmpi eq, %arg0, %c0_i32 : i32
    %12 = arith.extui %11 : i1 to i32
    %c0_i32_11 = arith.constant 0 : i32
    %13 = arith.cmpi ne, %12, %c0_i32_11 : i32
    scf.if %13 {
      %c0_74 = arith.constant 0 : index
      %c0_75 = arith.constant 0 : index
      %c0_76 = arith.constant 0 : index
      %244 = vector.load %arg1[%c0_74, %c0_75, %c0_76] : memref<8x8x128xf32, #tpu.memory_space<vmem>>, vector<8x8x128xf32>
      %245 = vector.shape_cast %244 : vector<8x8x128xf32> to vector<64x128xf32>
      %cst_77 = arith.constant dense<0.000000e+00> : vector<64x384xf32>
      %246 = tpu.matmul %245, %1, %cst_77 {dimension_numbers = #tpu.dot_dimension_numbers<[1], [0], [0], [1], [0, 0, 1, 1], [], []>} : vector<64x128xf32>, vector<128x384xf32>, vector<64x384xf32> -> vector<64x384xf32>
      %247 = vector.broadcast %5 : vector<1x384xf32> to vector<64x384xf32>
      %248 = arith.addf %246, %247 : vector<64x384xf32>
      %249 = vector.shape_cast %248 : vector<64x384xf32> to vector<8x8x384xf32>
      %c0_78 = arith.constant 0 : index
      %c0_79 = arith.constant 0 : index
      %c0_80 = arith.constant 0 : index
      %250 = vector.load %arg8[%c0_78, %c0_79, %c0_80] : memref<8x8x384xf32, #tpu.memory_space<vmem>>, vector<8x8x384xf32>
      tpu.vector_store %arg8[%c0_78, %c0_79, %c0_80], %249 {strides = array<i32>} : memref<8x8x384xf32, #tpu.memory_space<vmem>>, vector<8x8x384xf32>,
    } else {
    }
    %c0_i32_12 = arith.constant 0 : i32
    %14 = arith.cmpi ne, %arg0, %c0_i32_12 : i32
    %15 = arith.extui %14 : i1 to i32
    %c0_i32_13 = arith.constant 0 : i32
    %16 = arith.cmpi ne, %15, %c0_i32_13 : i32
    scf.if %16 {
      %c0_74 = arith.constant 0 : index
      %c0_75 = arith.constant 0 : index
      %c0_76 = arith.constant 0 : index
      %244 = vector.load %arg6[%c0_74, %c0_75, %c0_76] : memref<8x8x128xf32, #tpu.memory_space<vmem>>, vector<8x8x128xf32>
      %245 = vector.shape_cast %244 : vector<8x8x128xf32> to vector<64x128xf32>
      %cst_77 = arith.constant dense<0.000000e+00> : vector<64x384xf32>
      %246 = tpu.matmul %245, %1, %cst_77 {dimension_numbers = #tpu.dot_dimension_numbers<[1], [0], [0], [1], [0, 0, 1, 1], [], []>} : vector<64x128xf32>, vector<128x384xf32>, vector<64x384xf32> -> vector<64x384xf32>
      %247 = vector.broadcast %5 : vector<1x384xf32> to vector<64x384xf32>
      %248 = arith.addf %246, %247 : vector<64x384xf32>
      %249 = vector.shape_cast %248 : vector<64x384xf32> to vector<8x8x384xf32>
      %c0_78 = arith.constant 0 : index
      %c0_79 = arith.constant 0 : index
      %c0_80 = arith.constant 0 : index
      %250 = vector.load %arg8[%c0_78, %c0_79, %c0_80] : memref<8x8x384xf32, #tpu.memory_space<vmem>>, vector<8x8x384xf32>
      tpu.vector_store %arg8[%c0_78, %c0_79, %c0_80], %249 {strides = array<i32>} : memref<8x8x384xf32, #tpu.memory_space<vmem>>, vector<8x8x384xf32>,
    } else {
    }
    %c0_i32_14 = arith.constant 0 : i32
    %17 = arith.index_cast %c0_i32_14 : i32 to index
    %c0_15 = arith.constant 0 : index
    %c0_16 = arith.constant 0 : index
    %18 = vector.load %arg8[%17, %c0_15, %c0_16] : memref<8x8x384xf32, #tpu.memory_space<vmem>>, vector<1x8x384xf32>
    %19 = vector.shape_cast %18 : vector<1x8x384xf32> to vector<8x384xf32>
    %cst_17 = arith.constant dense<0.000000e+00> : vector<8x384xf32>
    %20 = tpu.matmul %10, %3, %cst_17 {dimension_numbers = #tpu.dot_dimension_numbers<[1], [0], [0], [1], [0, 0, 1, 1], [], []>} : vector<8x128xf32>, vector<128x384xf32>, vector<8x384xf32> -> vector<8x384xf32>
    %21 = vector.extract_strided_slice %19 {offsets = [0, 0], sizes = [8, 256], strides = [1, 1]} : vector<8x384xf32> to vector<8x256xf32>
    %22 = vector.extract_strided_slice %20 {offsets = [0, 0], sizes = [8, 256], strides = [1, 1]} : vector<8x384xf32> to vector<8x256xf32>
    %23 = arith.addf %21, %22 : vector<8x256xf32>
    %24 = arith.negf %23 : vector<8x256xf32>
    %25 = math.exp %24 : vector<8x256xf32>
    %cst_18 = arith.constant 1.000000e+00 : f32
    %26 = vector.broadcast %cst_18 : f32 to vector<8x256xf32>
    %27 = arith.addf %26, %25 : vector<8x256xf32>
    %28 = arith.divf %26, %27 : vector<8x256xf32>
    %29 = vector.extract_strided_slice %28 {offsets = [0, 0], sizes = [8, 128], strides = [1, 1]} : vector<8x256xf32> to vector<8x128xf32>
    %30 = vector.extract_strided_slice %28 {offsets = [0, 128], sizes = [8, 128], strides = [1, 1]} : vector<8x256xf32> to vector<8x128xf32>
    %31 = vector.extract_strided_slice %19 {offsets = [0, 256], sizes = [8, 128], strides = [1, 1]} : vector<8x384xf32> to vector<8x128xf32>
    %32 = vector.extract_strided_slice %20 {offsets = [0, 256], sizes = [8, 128], strides = [1, 1]} : vector<8x384xf32> to vector<8x128xf32>
    %33 = arith.addf %32, %9 : vector<8x128xf32>
    %34 = arith.mulf %29, %33 : vector<8x128xf32>
    %35 = arith.addf %31, %34 : vector<8x128xf32>
    %36 = math.tanh %35 : vector<8x128xf32>
    %37 = arith.subf %10, %36 : vector<8x128xf32>
    %38 = arith.mulf %30, %37 : vector<8x128xf32>
    %39 = arith.addf %36, %38 : vector<8x128xf32>
    %c0_i32_19 = arith.constant 0 : i32
    %40 = arith.addi %c0_i32_19, %c0_i32_14 : i32
    %41 = arith.index_cast %40 : i32 to index
    %c0_20 = arith.constant 0 : index
    %c0_21 = arith.constant 0 : index
    %42 = vector.load %arg6[%41, %c0_20, %c0_21] : memref<8x8x128xf32, #tpu.memory_space<vmem>>, vector<1x8x128xf32>
    %43 = vector.shape_cast %42 : vector<1x8x128xf32> to vector<8x128xf32>
    %44 = vector.shape_cast %39 : vector<8x128xf32> to vector<1x8x128xf32>
    tpu.vector_store %arg6[%41, %c0_20, %c0_21], %44 {strides = array<i32>} : memref<8x8x128xf32, #tpu.memory_space<vmem>>, vector<1x8x128xf32>,
    %c1_i32 = arith.constant 1 : i32
    %45 = arith.index_cast %c1_i32 : i32 to index
    %c0_22 = arith.constant 0 : index
    %c0_23 = arith.constant 0 : index
    %46 = vector.load %arg8[%45, %c0_22, %c0_23] : memref<8x8x384xf32, #tpu.memory_space<vmem>>, vector<1x8x384xf32>
    %47 = vector.shape_cast %46 : vector<1x8x384xf32> to vector<8x384xf32>
    %cst_24 = arith.constant dense<0.000000e+00> : vector<8x384xf32>
    %48 = tpu.matmul %39, %3, %cst_24 {dimension_numbers = #tpu.dot_dimension_numbers<[1], [0], [0], [1], [0, 0, 1, 1], [], []>} : vector<8x128xf32>, vector<128x384xf32>, vector<8x384xf32> -> vector<8x384xf32>
    %49 = vector.extract_strided_slice %47 {offsets = [0, 0], sizes = [8, 256], strides = [1, 1]} : vector<8x384xf32> to vector<8x256xf32>
    %50 = vector.extract_strided_slice %48 {offsets = [0, 0], sizes = [8, 256], strides = [1, 1]} : vector<8x384xf32> to vector<8x256xf32>
    %51 = arith.addf %49, %50 : vector<8x256xf32>
    %52 = arith.negf %51 : vector<8x256xf32>
    %53 = math.exp %52 : vector<8x256xf32>
    %cst_25 = arith.constant 1.000000e+00 : f32
    %54 = vector.broadcast %cst_25 : f32 to vector<8x256xf32>
    %55 = arith.addf %54, %53 : vector<8x256xf32>
    %56 = arith.divf %54, %55 : vector<8x256xf32>
    %57 = vector.extract_strided_slice %56 {offsets = [0, 0], sizes = [8, 128], strides = [1, 1]} : vector<8x256xf32> to vector<8x128xf32>
    %58 = vector.extract_strided_slice %56 {offsets = [0, 128], sizes = [8, 128], strides = [1, 1]} : vector<8x256xf32> to vector<8x128xf32>
    %59 = vector.extract_strided_slice %47 {offsets = [0, 256], sizes = [8, 128], strides = [1, 1]} : vector<8x384xf32> to vector<8x128xf32>
    %60 = vector.extract_strided_slice %48 {offsets = [0, 256], sizes = [8, 128], strides = [1, 1]} : vector<8x384xf32> to vector<8x128xf32>
    %61 = arith.addf %60, %9 : vector<8x128xf32>
    %62 = arith.mulf %57, %61 : vector<8x128xf32>
    %63 = arith.addf %59, %62 : vector<8x128xf32>
    %64 = math.tanh %63 : vector<8x128xf32>
    %65 = arith.subf %39, %64 : vector<8x128xf32>
    %66 = arith.mulf %58, %65 : vector<8x128xf32>
    %67 = arith.addf %64, %66 : vector<8x128xf32>
    %c0_i32_26 = arith.constant 0 : i32
    %68 = arith.addi %c0_i32_26, %c1_i32 : i32
    %69 = arith.index_cast %68 : i32 to index
    %c0_27 = arith.constant 0 : index
    %c0_28 = arith.constant 0 : index
    %70 = vector.load %arg6[%69, %c0_27, %c0_28] : memref<8x8x128xf32, #tpu.memory_space<vmem>>, vector<1x8x128xf32>
    %71 = vector.shape_cast %70 : vector<1x8x128xf32> to vector<8x128xf32>
    %72 = vector.shape_cast %67 : vector<8x128xf32> to vector<1x8x128xf32>
    tpu.vector_store %arg6[%69, %c0_27, %c0_28], %72 {strides = array<i32>} : memref<8x8x128xf32, #tpu.memory_space<vmem>>, vector<1x8x128xf32>,
    %c2_i32 = arith.constant 2 : i32
    %73 = arith.index_cast %c2_i32 : i32 to index
    %c0_29 = arith.constant 0 : index
    %c0_30 = arith.constant 0 : index
    %74 = vector.load %arg8[%73, %c0_29, %c0_30] : memref<8x8x384xf32, #tpu.memory_space<vmem>>, vector<1x8x384xf32>
    %75 = vector.shape_cast %74 : vector<1x8x384xf32> to vector<8x384xf32>
    %cst_31 = arith.constant dense<0.000000e+00> : vector<8x384xf32>
    %76 = tpu.matmul %67, %3, %cst_31 {dimension_numbers = #tpu.dot_dimension_numbers<[1], [0], [0], [1], [0, 0, 1, 1], [], []>} : vector<8x128xf32>, vector<128x384xf32>, vector<8x384xf32> -> vector<8x384xf32>
    %77 = vector.extract_strided_slice %75 {offsets = [0, 0], sizes = [8, 256], strides = [1, 1]} : vector<8x384xf32> to vector<8x256xf32>
    %78 = vector.extract_strided_slice %76 {offsets = [0, 0], sizes = [8, 256], strides = [1, 1]} : vector<8x384xf32> to vector<8x256xf32>
    %79 = arith.addf %77, %78 : vector<8x256xf32>
    %80 = arith.negf %79 : vector<8x256xf32>
    %81 = math.exp %80 : vector<8x256xf32>
    %cst_32 = arith.constant 1.000000e+00 : f32
    %82 = vector.broadcast %cst_32 : f32 to vector<8x256xf32>
    %83 = arith.addf %82, %81 : vector<8x256xf32>
    %84 = arith.divf %82, %83 : vector<8x256xf32>
    %85 = vector.extract_strided_slice %84 {offsets = [0, 0], sizes = [8, 128], strides = [1, 1]} : vector<8x256xf32> to vector<8x128xf32>
    %86 = vector.extract_strided_slice %84 {offsets = [0, 128], sizes = [8, 128], strides = [1, 1]} : vector<8x256xf32> to vector<8x128xf32>
    %87 = vector.extract_strided_slice %75 {offsets = [0, 256], sizes = [8, 128], strides = [1, 1]} : vector<8x384xf32> to vector<8x128xf32>
    %88 = vector.extract_strided_slice %76 {offsets = [0, 256], sizes = [8, 128], strides = [1, 1]} : vector<8x384xf32> to vector<8x128xf32>
    %89 = arith.addf %88, %9 : vector<8x128xf32>
    %90 = arith.mulf %85, %89 : vector<8x128xf32>
    %91 = arith.addf %87, %90 : vector<8x128xf32>
    %92 = math.tanh %91 : vector<8x128xf32>
    %93 = arith.subf %67, %92 : vector<8x128xf32>
    %94 = arith.mulf %86, %93 : vector<8x128xf32>
    %95 = arith.addf %92, %94 : vector<8x128xf32>
    %c0_i32_33 = arith.constant 0 : i32
    %96 = arith.addi %c0_i32_33, %c2_i32 : i32
    %97 = arith.index_cast %96 : i32 to index
    %c0_34 = arith.constant 0 : index
    %c0_35 = arith.constant 0 : index
    %98 = vector.load %arg6[%97, %c0_34, %c0_35] : memref<8x8x128xf32, #tpu.memory_space<vmem>>, vector<1x8x128xf32>
    %99 = vector.shape_cast %98 : vector<1x8x128xf32> to vector<8x128xf32>
    %100 = vector.shape_cast %95 : vector<8x128xf32> to vector<1x8x128xf32>
    tpu.vector_store %arg6[%97, %c0_34, %c0_35], %100 {strides = array<i32>} : memref<8x8x128xf32, #tpu.memory_space<vmem>>, vector<1x8x128xf32>,
    %c3_i32 = arith.constant 3 : i32
    %101 = arith.index_cast %c3_i32 : i32 to index
    %c0_36 = arith.constant 0 : index
    %c0_37 = arith.constant 0 : index
    %102 = vector.load %arg8[%101, %c0_36, %c0_37] : memref<8x8x384xf32, #tpu.memory_space<vmem>>, vector<1x8x384xf32>
    %103 = vector.shape_cast %102 : vector<1x8x384xf32> to vector<8x384xf32>
    %cst_38 = arith.constant dense<0.000000e+00> : vector<8x384xf32>
    %104 = tpu.matmul %95, %3, %cst_38 {dimension_numbers = #tpu.dot_dimension_numbers<[1], [0], [0], [1], [0, 0, 1, 1], [], []>} : vector<8x128xf32>, vector<128x384xf32>, vector<8x384xf32> -> vector<8x384xf32>
    %105 = vector.extract_strided_slice %103 {offsets = [0, 0], sizes = [8, 256], strides = [1, 1]} : vector<8x384xf32> to vector<8x256xf32>
    %106 = vector.extract_strided_slice %104 {offsets = [0, 0], sizes = [8, 256], strides = [1, 1]} : vector<8x384xf32> to vector<8x256xf32>
    %107 = arith.addf %105, %106 : vector<8x256xf32>
    %108 = arith.negf %107 : vector<8x256xf32>
    %109 = math.exp %108 : vector<8x256xf32>
    %cst_39 = arith.constant 1.000000e+00 : f32
    %110 = vector.broadcast %cst_39 : f32 to vector<8x256xf32>
    %111 = arith.addf %110, %109 : vector<8x256xf32>
    %112 = arith.divf %110, %111 : vector<8x256xf32>
    %113 = vector.extract_strided_slice %112 {offsets = [0, 0], sizes = [8, 128], strides = [1, 1]} : vector<8x256xf32> to vector<8x128xf32>
    %114 = vector.extract_strided_slice %112 {offsets = [0, 128], sizes = [8, 128], strides = [1, 1]} : vector<8x256xf32> to vector<8x128xf32>
    %115 = vector.extract_strided_slice %103 {offsets = [0, 256], sizes = [8, 128], strides = [1, 1]} : vector<8x384xf32> to vector<8x128xf32>
    %116 = vector.extract_strided_slice %104 {offsets = [0, 256], sizes = [8, 128], strides = [1, 1]} : vector<8x384xf32> to vector<8x128xf32>
    %117 = arith.addf %116, %9 : vector<8x128xf32>
    %118 = arith.mulf %113, %117 : vector<8x128xf32>
    %119 = arith.addf %115, %118 : vector<8x128xf32>
    %120 = math.tanh %119 : vector<8x128xf32>
    %121 = arith.subf %95, %120 : vector<8x128xf32>
    %122 = arith.mulf %114, %121 : vector<8x128xf32>
    %123 = arith.addf %120, %122 : vector<8x128xf32>
    %c0_i32_40 = arith.constant 0 : i32
    %124 = arith.addi %c0_i32_40, %c3_i32 : i32
    %125 = arith.index_cast %124 : i32 to index
    %c0_41 = arith.constant 0 : index
    %c0_42 = arith.constant 0 : index
    %126 = vector.load %arg6[%125, %c0_41, %c0_42] : memref<8x8x128xf32, #tpu.memory_space<vmem>>, vector<1x8x128xf32>
    %127 = vector.shape_cast %126 : vector<1x8x128xf32> to vector<8x128xf32>
    %128 = vector.shape_cast %123 : vector<8x128xf32> to vector<1x8x128xf32>
    tpu.vector_store %arg6[%125, %c0_41, %c0_42], %128 {strides = array<i32>} : memref<8x8x128xf32, #tpu.memory_space<vmem>>, vector<1x8x128xf32>,
    %c4_i32 = arith.constant 4 : i32
    %129 = arith.index_cast %c4_i32 : i32 to index
    %c0_43 = arith.constant 0 : index
    %c0_44 = arith.constant 0 : index
    %130 = vector.load %arg8[%129, %c0_43, %c0_44] : memref<8x8x384xf32, #tpu.memory_space<vmem>>, vector<1x8x384xf32>
    %131 = vector.shape_cast %130 : vector<1x8x384xf32> to vector<8x384xf32>
    %cst_45 = arith.constant dense<0.000000e+00> : vector<8x384xf32>
    %132 = tpu.matmul %123, %3, %cst_45 {dimension_numbers = #tpu.dot_dimension_numbers<[1], [0], [0], [1], [0, 0, 1, 1], [], []>} : vector<8x128xf32>, vector<128x384xf32>, vector<8x384xf32> -> vector<8x384xf32>
    %133 = vector.extract_strided_slice %131 {offsets = [0, 0], sizes = [8, 256], strides = [1, 1]} : vector<8x384xf32> to vector<8x256xf32>
    %134 = vector.extract_strided_slice %132 {offsets = [0, 0], sizes = [8, 256], strides = [1, 1]} : vector<8x384xf32> to vector<8x256xf32>
    %135 = arith.addf %133, %134 : vector<8x256xf32>
    %136 = arith.negf %135 : vector<8x256xf32>
    %137 = math.exp %136 : vector<8x256xf32>
    %cst_46 = arith.constant 1.000000e+00 : f32
    %138 = vector.broadcast %cst_46 : f32 to vector<8x256xf32>
    %139 = arith.addf %138, %137 : vector<8x256xf32>
    %140 = arith.divf %138, %139 : vector<8x256xf32>
    %141 = vector.extract_strided_slice %140 {offsets = [0, 0], sizes = [8, 128], strides = [1, 1]} : vector<8x256xf32> to vector<8x128xf32>
    %142 = vector.extract_strided_slice %140 {offsets = [0, 128], sizes = [8, 128], strides = [1, 1]} : vector<8x256xf32> to vector<8x128xf32>
    %143 = vector.extract_strided_slice %131 {offsets = [0, 256], sizes = [8, 128], strides = [1, 1]} : vector<8x384xf32> to vector<8x128xf32>
    %144 = vector.extract_strided_slice %132 {offsets = [0, 256], sizes = [8, 128], strides = [1, 1]} : vector<8x384xf32> to vector<8x128xf32>
    %145 = arith.addf %144, %9 : vector<8x128xf32>
    %146 = arith.mulf %141, %145 : vector<8x128xf32>
    %147 = arith.addf %143, %146 : vector<8x128xf32>
    %148 = math.tanh %147 : vector<8x128xf32>
    %149 = arith.subf %123, %148 : vector<8x128xf32>
    %150 = arith.mulf %142, %149 : vector<8x128xf32>
    %151 = arith.addf %148, %150 : vector<8x128xf32>
    %c0_i32_47 = arith.constant 0 : i32
    %152 = arith.addi %c0_i32_47, %c4_i32 : i32
    %153 = arith.index_cast %152 : i32 to index
    %c0_48 = arith.constant 0 : index
    %c0_49 = arith.constant 0 : index
    %154 = vector.load %arg6[%153, %c0_48, %c0_49] : memref<8x8x128xf32, #tpu.memory_space<vmem>>, vector<1x8x128xf32>
    %155 = vector.shape_cast %154 : vector<1x8x128xf32> to vector<8x128xf32>
    %156 = vector.shape_cast %151 : vector<8x128xf32> to vector<1x8x128xf32>
    tpu.vector_store %arg6[%153, %c0_48, %c0_49], %156 {strides = array<i32>} : memref<8x8x128xf32, #tpu.memory_space<vmem>>, vector<1x8x128xf32>,
    %c5_i32 = arith.constant 5 : i32
    %157 = arith.index_cast %c5_i32 : i32 to index
    %c0_50 = arith.constant 0 : index
    %c0_51 = arith.constant 0 : index
    %158 = vector.load %arg8[%157, %c0_50, %c0_51] : memref<8x8x384xf32, #tpu.memory_space<vmem>>, vector<1x8x384xf32>
    %159 = vector.shape_cast %158 : vector<1x8x384xf32> to vector<8x384xf32>
    %cst_52 = arith.constant dense<0.000000e+00> : vector<8x384xf32>
    %160 = tpu.matmul %151, %3, %cst_52 {dimension_numbers = #tpu.dot_dimension_numbers<[1], [0], [0], [1], [0, 0, 1, 1], [], []>} : vector<8x128xf32>, vector<128x384xf32>, vector<8x384xf32> -> vector<8x384xf32>
    %161 = vector.extract_strided_slice %159 {offsets = [0, 0], sizes = [8, 256], strides = [1, 1]} : vector<8x384xf32> to vector<8x256xf32>
    %162 = vector.extract_strided_slice %160 {offsets = [0, 0], sizes = [8, 256], strides = [1, 1]} : vector<8x384xf32> to vector<8x256xf32>
    %163 = arith.addf %161, %162 : vector<8x256xf32>
    %164 = arith.negf %163 : vector<8x256xf32>
    %165 = math.exp %164 : vector<8x256xf32>
    %cst_53 = arith.constant 1.000000e+00 : f32
    %166 = vector.broadcast %cst_53 : f32 to vector<8x256xf32>
    %167 = arith.addf %166, %165 : vector<8x256xf32>
    %168 = arith.divf %166, %167 : vector<8x256xf32>
    %169 = vector.extract_strided_slice %168 {offsets = [0, 0], sizes = [8, 128], strides = [1, 1]} : vector<8x256xf32> to vector<8x128xf32>
    %170 = vector.extract_strided_slice %168 {offsets = [0, 128], sizes = [8, 128], strides = [1, 1]} : vector<8x256xf32> to vector<8x128xf32>
    %171 = vector.extract_strided_slice %159 {offsets = [0, 256], sizes = [8, 128], strides = [1, 1]} : vector<8x384xf32> to vector<8x128xf32>
    %172 = vector.extract_strided_slice %160 {offsets = [0, 256], sizes = [8, 128], strides = [1, 1]} : vector<8x384xf32> to vector<8x128xf32>
    %173 = arith.addf %172, %9 : vector<8x128xf32>
    %174 = arith.mulf %169, %173 : vector<8x128xf32>
    %175 = arith.addf %171, %174 : vector<8x128xf32>
    %176 = math.tanh %175 : vector<8x128xf32>
    %177 = arith.subf %151, %176 : vector<8x128xf32>
    %178 = arith.mulf %170, %177 : vector<8x128xf32>
    %179 = arith.addf %176, %178 : vector<8x128xf32>
    %c0_i32_54 = arith.constant 0 : i32
    %180 = arith.addi %c0_i32_54, %c5_i32 : i32
    %181 = arith.index_cast %180 : i32 to index
    %c0_55 = arith.constant 0 : index
    %c0_56 = arith.constant 0 : index
    %182 = vector.load %arg6[%181, %c0_55, %c0_56] : memref<8x8x128xf32, #tpu.memory_space<vmem>>, vector<1x8x128xf32>
    %183 = vector.shape_cast %182 : vector<1x8x128xf32> to vector<8x128xf32>
    %184 = vector.shape_cast %179 : vector<8x128xf32> to vector<1x8x128xf32>
    tpu.vector_store %arg6[%181, %c0_55, %c0_56], %184 {strides = array<i32>} : memref<8x8x128xf32, #tpu.memory_space<vmem>>, vector<1x8x128xf32>,
    %c6_i32 = arith.constant 6 : i32
    %185 = arith.index_cast %c6_i32 : i32 to index
    %c0_57 = arith.constant 0 : index
    %c0_58 = arith.constant 0 : index
    %186 = vector.load %arg8[%185, %c0_57, %c0_58] : memref<8x8x384xf32, #tpu.memory_space<vmem>>, vector<1x8x384xf32>
    %187 = vector.shape_cast %186 : vector<1x8x384xf32> to vector<8x384xf32>
    %cst_59 = arith.constant dense<0.000000e+00> : vector<8x384xf32>
    %188 = tpu.matmul %179, %3, %cst_59 {dimension_numbers = #tpu.dot_dimension_numbers<[1], [0], [0], [1], [0, 0, 1, 1], [], []>} : vector<8x128xf32>, vector<128x384xf32>, vector<8x384xf32> -> vector<8x384xf32>
    %189 = vector.extract_strided_slice %187 {offsets = [0, 0], sizes = [8, 256], strides = [1, 1]} : vector<8x384xf32> to vector<8x256xf32>
    %190 = vector.extract_strided_slice %188 {offsets = [0, 0], sizes = [8, 256], strides = [1, 1]} : vector<8x384xf32> to vector<8x256xf32>
    %191 = arith.addf %189, %190 : vector<8x256xf32>
    %192 = arith.negf %191 : vector<8x256xf32>
    %193 = math.exp %192 : vector<8x256xf32>
    %cst_60 = arith.constant 1.000000e+00 : f32
    %194 = vector.broadcast %cst_60 : f32 to vector<8x256xf32>
    %195 = arith.addf %194, %193 : vector<8x256xf32>
    %196 = arith.divf %194, %195 : vector<8x256xf32>
    %197 = vector.extract_strided_slice %196 {offsets = [0, 0], sizes = [8, 128], strides = [1, 1]} : vector<8x256xf32> to vector<8x128xf32>
    %198 = vector.extract_strided_slice %196 {offsets = [0, 128], sizes = [8, 128], strides = [1, 1]} : vector<8x256xf32> to vector<8x128xf32>
    %199 = vector.extract_strided_slice %187 {offsets = [0, 256], sizes = [8, 128], strides = [1, 1]} : vector<8x384xf32> to vector<8x128xf32>
    %200 = vector.extract_strided_slice %188 {offsets = [0, 256], sizes = [8, 128], strides = [1, 1]} : vector<8x384xf32> to vector<8x128xf32>
    %201 = arith.addf %200, %9 : vector<8x128xf32>
    %202 = arith.mulf %197, %201 : vector<8x128xf32>
    %203 = arith.addf %199, %202 : vector<8x128xf32>
    %204 = math.tanh %203 : vector<8x128xf32>
    %205 = arith.subf %179, %204 : vector<8x128xf32>
    %206 = arith.mulf %198, %205 : vector<8x128xf32>
    %207 = arith.addf %204, %206 : vector<8x128xf32>
    %c0_i32_61 = arith.constant 0 : i32
    %208 = arith.addi %c0_i32_61, %c6_i32 : i32
    %209 = arith.index_cast %208 : i32 to index
    %c0_62 = arith.constant 0 : index
    %c0_63 = arith.constant 0 : index
    %210 = vector.load %arg6[%209, %c0_62, %c0_63] : memref<8x8x128xf32, #tpu.memory_space<vmem>>, vector<1x8x128xf32>
    %211 = vector.shape_cast %210 : vector<1x8x128xf32> to vector<8x128xf32>
    %212 = vector.shape_cast %207 : vector<8x128xf32> to vector<1x8x128xf32>
    tpu.vector_store %arg6[%209, %c0_62, %c0_63], %212 {strides = array<i32>} : memref<8x8x128xf32, #tpu.memory_space<vmem>>, vector<1x8x128xf32>,
    %c7_i32 = arith.constant 7 : i32
    %213 = arith.index_cast %c7_i32 : i32 to index
    %c0_64 = arith.constant 0 : index
    %c0_65 = arith.constant 0 : index
    %214 = vector.load %arg8[%213, %c0_64, %c0_65] : memref<8x8x384xf32, #tpu.memory_space<vmem>>, vector<1x8x384xf32>
    %215 = vector.shape_cast %214 : vector<1x8x384xf32> to vector<8x384xf32>
    %cst_66 = arith.constant dense<0.000000e+00> : vector<8x384xf32>
    %216 = tpu.matmul %207, %3, %cst_66 {dimension_numbers = #tpu.dot_dimension_numbers<[1], [0], [0], [1], [0, 0, 1, 1], [], []>} : vector<8x128xf32>, vector<128x384xf32>, vector<8x384xf32> -> vector<8x384xf32>
    %217 = vector.extract_strided_slice %215 {offsets = [0, 0], sizes = [8, 256], strides = [1, 1]} : vector<8x384xf32> to vector<8x256xf32>
    %218 = vector.extract_strided_slice %216 {offsets = [0, 0], sizes = [8, 256], strides = [1, 1]} : vector<8x384xf32> to vector<8x256xf32>
    %219 = arith.addf %217, %218 : vector<8x256xf32>
    %220 = arith.negf %219 : vector<8x256xf32>
    %221 = math.exp %220 : vector<8x256xf32>
    %cst_67 = arith.constant 1.000000e+00 : f32
    %222 = vector.broadcast %cst_67 : f32 to vector<8x256xf32>
    %223 = arith.addf %222, %221 : vector<8x256xf32>
    %224 = arith.divf %222, %223 : vector<8x256xf32>
    %225 = vector.extract_strided_slice %224 {offsets = [0, 0], sizes = [8, 128], strides = [1, 1]} : vector<8x256xf32> to vector<8x128xf32>
    %226 = vector.extract_strided_slice %224 {offsets = [0, 128], sizes = [8, 128], strides = [1, 1]} : vector<8x256xf32> to vector<8x128xf32>
    %227 = vector.extract_strided_slice %215 {offsets = [0, 256], sizes = [8, 128], strides = [1, 1]} : vector<8x384xf32> to vector<8x128xf32>
    %228 = vector.extract_strided_slice %216 {offsets = [0, 256], sizes = [8, 128], strides = [1, 1]} : vector<8x384xf32> to vector<8x128xf32>
    %229 = arith.addf %228, %9 : vector<8x128xf32>
    %230 = arith.mulf %225, %229 : vector<8x128xf32>
    %231 = arith.addf %227, %230 : vector<8x128xf32>
    %232 = math.tanh %231 : vector<8x128xf32>
    %233 = arith.subf %207, %232 : vector<8x128xf32>
    %234 = arith.mulf %226, %233 : vector<8x128xf32>
    %235 = arith.addf %232, %234 : vector<8x128xf32>
    %c0_i32_68 = arith.constant 0 : i32
    %236 = arith.addi %c0_i32_68, %c7_i32 : i32
    %237 = arith.index_cast %236 : i32 to index
    %c0_69 = arith.constant 0 : index
    %c0_70 = arith.constant 0 : index
    %238 = vector.load %arg6[%237, %c0_69, %c0_70] : memref<8x8x128xf32, #tpu.memory_space<vmem>>, vector<1x8x128xf32>
    %239 = vector.shape_cast %238 : vector<1x8x128xf32> to vector<8x128xf32>
    %240 = vector.shape_cast %235 : vector<8x128xf32> to vector<1x8x128xf32>
    tpu.vector_store %arg6[%237, %c0_69, %c0_70], %240 {strides = array<i32>} : memref<8x8x128xf32, #tpu.memory_space<vmem>>, vector<1x8x128xf32>,
    %c8_i32 = arith.constant 8 : i32
    %c0_71 = arith.constant 0 : index
    %c0_72 = arith.constant 0 : index
    %c0_73 = arith.constant 0 : index
    %241 = vector.load %arg7[%c0_71, %c0_72, %c0_73] : memref<1x8x128xf32, #tpu.memory_space<vmem>>, vector<1x8x128xf32>
    %242 = vector.shape_cast %241 : vector<1x8x128xf32> to vector<8x128xf32>
    %243 = vector.shape_cast %235 : vector<8x128xf32> to vector<1x8x128xf32>
    tpu.vector_store %arg7[%c0_71, %c0_72, %c0_73], %243 {strides = array<i32>} : memref<1x8x128xf32, #tpu.memory_space<vmem>>, vector<1x8x128xf32>,
    return
  }
  func.func @transform_0(%arg0: i32) -> (i32, i32, i32) {
    %c0_i32 = arith.constant 0 : i32
    %c0_i32_0 = arith.constant 0 : i32
    %c0_i32_1 = arith.constant 0 : i32
    %c0_i32_2 = arith.constant 0 : i32
    return %c0_i32, %c0_i32_0, %c0_i32_1 : i32, i32, i32
  }
  func.func @transform_1(%arg0: i32) -> (i32, i32, i32) {
    %c0_i32 = arith.constant 0 : i32
    %c0_i32_0 = arith.constant 0 : i32
    %c0_i32_1 = arith.constant 0 : i32
    return %arg0, %c0_i32, %c0_i32_0 : i32, i32, i32
  }
  func.func @transform_2(%arg0: i32) -> (i32, i32, i32) {
    %c0_i32 = arith.constant 0 : i32
    %c0_i32_0 = arith.constant 0 : i32
    %c0_i32_1 = arith.constant 0 : i32
    return %arg0, %c0_i32, %c0_i32_0 : i32, i32, i32
  }
  func.func @transform_3(%arg0: i32) -> (i32, i32, i32) {
    %c0_i32 = arith.constant 0 : i32
    %c0_i32_0 = arith.constant 0 : i32
    %c0_i32_1 = arith.constant 0 : i32
    return %arg0, %c0_i32, %c0_i32_0 : i32, i32, i32
  }
  func.func @transform_4(%arg0: i32) -> (i32, i32, i32) {
    %c0_i32 = arith.constant 0 : i32
    %c0_i32_0 = arith.constant 0 : i32
    %c0_i32_1 = arith.constant 0 : i32
    return %arg0, %c0_i32, %c0_i32_0 : i32, i32, i32
  }
  func.func @transform_5(%arg0: i32) -> (i32, i32, i32) {
    %c0_i32 = arith.constant 0 : i32
    %c0_i32_0 = arith.constant 0 : i32
    %c0_i32_1 = arith.constant 0 : i32
    %c0_i32_2 = arith.constant 0 : i32
    return %c0_i32, %c0_i32_0, %c0_i32_1 : i32, i32, i32
  }
  func.func @transform_6(%arg0: i32) -> (i32, i32, i32) {
    %c0_i32 = arith.constant 0 : i32
    %c0_i32_0 = arith.constant 0 : i32
    %c0_i32_1 = arith.constant 0 : i32
    return %arg0, %c0_i32, %c0_i32_0 : i32, i32, i32
  }
}

</mosaic_0001>

<llo_original>
// kernel: tpu_custom_call.1
$region0: #{tpu_custom_call.1}
  #allocation0 [shape = 'u32[]', space=smem, size = 0x4, offset = 0x4, fixed_abs, tag = 'smem constant byte address 0x4 - core index']
  #allocation1 [shape = 'u32[144,128]{1,0:T(1,128)}', space=vmem, size = 0x12000, scoped, tag = 'internal scratch']
  #allocation2 [shape = 'f32[8,8,384]{2,1,0:T(8,128)}', space=vmem, size = 0x18000, scoped, tag = 'scratch operand']
  %s0 = inlined_call_operand.hbm [shape: f32[8,8,128], index: 0, kind: input, shape index: {}]
  %s1 = inlined_call_operand.hbm [shape: f32[2,128,384], index: 1, kind: input, shape index: {}]
  %s2 = inlined_call_operand.hbm [shape: f32[2,128,384], index: 2, kind: input, shape index: {}]
  %s3 = inlined_call_operand.hbm [shape: f32[2,1,384], index: 3, kind: input, shape index: {}]
  %s4 = inlined_call_operand.vmem [shape: f32[2,1,128], index: 4, kind: input, shape index: {}]
  %s5 = inlined_call_operand.hbm [shape: f32[8,8,128], index: 5, kind: output, shape index: {0}]
  %s6 = inlined_call_operand.hbm [shape: f32[2,8,128], index: 6, kind: output, shape index: {1}]
  %7 = xla_tuple %s5, %s6
  %s8 = sld [smem:[#allocation0]]
  $region85: #{tpu_custom_call.1} parent=0
    _
  %s10 = ssub.s32 1, %s8
  %s11 = scalar_select 0, %s10, %s8
  $region1: #{tpu_custom_call.1} parent=0
    #allocation3 [shape = 'u8[32768]{0}', space=vmem, size = 0x8000, scoped, tag = 'input window, operand 0, single buffered']
    #allocation4 [shape = 's32[2]{0}', space=sflag, size = 0x8, scoped, tag = 'scoped memory for tpu_custom_call.1']
    #allocation5 [shape = 's32[2]{0}', space=sflag, size = 0x8, scoped, tag = 'scoped memory for tpu_custom_call.1']
    #allocation6 [shape = 'u8[393216]{0}', space=vmem, size = 0x60000, scoped, tag = 'input window, operand 1']
    #allocation7 [shape = 's32[2]{0}', space=sflag, size = 0x8, scoped, tag = 'scoped memory for tpu_custom_call.1']
    #allocation8 [shape = 'u8[393216]{0}', space=vmem, size = 0x60000, scoped, tag = 'input window, operand 2']
    #allocation9 [shape = 'u8[3072]{0}', space=vmem, size = 0xc00, scoped, tag = 'input window, operand 3']
    #allocation10 [shape = 's32[2]{0}', space=sflag, size = 0x8, scoped, tag = 'scoped memory for tpu_custom_call.1']
    #allocation11 [shape = 'u8[32768]{0}', space=vmem, size = 0x8000, scoped, tag = 'output window, operand 0, single buffered']
    #allocation12 [shape = 'u8[8192]{0}', space=vmem, size = 0x2000, scoped, tag = 'output window, operand 1']
    #allocation13 [shape = 's32[2]{0}', space=sflag, size = 0x8, scoped, tag = 'scoped memory for tpu_custom_call.1']
    %12 = vsyncpa [#allocation4], 0
    %13 = vsyncpa [#allocation7], 0
    %s14 = scalar_lea.sflag [#allocation7], 1
    %15 = vsyncpa %s14, 0
    %16 = vsyncpa [#allocation10], 0
    %s17 = scalar_lea.sflag [#allocation10], 1
    %18 = vsyncpa %s17, 0
    %19 = vsyncpa [#allocation5], 0
    %20 = vsyncpa [#allocation13], 0
    %s21 = scalar_lea.sflag [#allocation13], 1
    %22 = vsyncpa %s21, 0
    loop: start=0, step=1, limit=4
    $region2: #{tpu_custom_call.1} parent=1 // loop_pre_header
      _
    $region3: #{tpu_custom_call.1} parent=1 // loop_header
      %s24 = sphi 0, %s28
      %p25 = scmp.ge.s32.totalorder %s24, 4
      %s32 = sphi 0, %s32
      %s34 = sphi 0, %s32
      %s35 = sphi 0, %s34
      %s49 = sphi 0, %s35
      %s55 = sphi 0, %s57
      %s58 = sphi 0, %s55
      %s59 = sphi 0, %s58
      %s75 = sphi 0, %s59
      %s81 = sphi 0, %s83
      %s84 = sphi 0, %s81
      %s85 = sphi 0, %s84
      %s101 = sphi 0, %s85
      %s107 = sphi 0, %s109
      %s110 = sphi 0, %s107
      %s111 = sphi 0, %s110
      %s127 = sphi 0, %s111
      %s133 = sphi 0, %s135
      %s136 = sphi 0, %s133
      %s137 = sphi 0, %s136
      %s153 = sphi 0, %s137
      %s157 = sphi 0, %s157
      %s159 = sphi 0, %s157
      %s160 = sphi 0, %s159
      %s174 = sphi 0, %s160
      %s180 = sphi 0, %s182
      %s183 = sphi 0, %s180
      %s184 = sphi 0, %s183
      %s200 = sphi 0, %s184
    $region4: #{tpu_custom_call.1} parent=1 // loop_header_branch
      %27 = sbr.rel (%p25) target = $region8
    $region5: #{tpu_custom_call.1} parent=1 // loop_body
      %s29 = ssub.s32 %s24, 1
      %s30 = ssub.s32 %s24, 2
      %s31 = sadd.s32 %s24, 1
      %s33 = sadd.s32 %s32, 1
      %p36 = scmp.eq.s32.totalorder %s24, 1
      %p37 = scmp.ne.s32.totalorder %s32, %s34
      %p38 = scmp.eq.s32.totalorder %s24, 0
      %p39 = por %p37, %p38
      %p40 = scmp.ne.s32.totalorder %s32, %s34
      %p41 = scmp.eq.s32.totalorder %s29, 1
      %p42 = por %p40, %p41
      %p43 = scmp.ne.s32.totalorder %s34, %s35
      %p44 = scmp.eq.s32.totalorder %s29, 0
      %p45 = por %p43, %p44
      %p46 = scmp.ne.s32.totalorder %s34, %s35
      %p47 = scmp.eq.s32.totalorder %s30, 1
      %p48 = por %p46, %p47
      %p50 = scmp.ne.s32.totalorder %s35, %s49
      %p51 = scmp.eq.s32.totalorder %s30, 0
      %p52 = por %p50, %p51
      %s53 = ssub.s32 %s24, %s31
      %p54 = scmp.eq.s32.totalorder %s53, 0
      %s56 = sadd.s32 %s55, 1
      %s57 = scalar_select %p54, %s55, %s56
      %p60 = pneg %p54
      %p61 = scmp.eq.s32.totalorder %s24, 1
      %p62 = por %p60, %p61
      %p63 = scmp.ne.s32.totalorder %s55, %s58
      %p64 = scmp.eq.s32.totalorder %s24, 0
      %p65 = por %p63, %p64
      %p66 = scmp.ne.s32.totalorder %s55, %s58
      %p67 = scmp.eq.s32.totalorder %s29, 1
      %p68 = por %p66, %p67
      %p69 = scmp.ne.s32.totalorder %s58, %s59
      %p70 = scmp.eq.s32.totalorder %s29, 0
      %p71 = por %p69, %p70
      %p72 = scmp.ne.s32.totalorder %s58, %s59
      %p73 = scmp.eq.s32.totalorder %s30, 1
      %p74 = por %p72, %p73
      %p76 = scmp.ne.s32.totalorder %s59, %s75
      %p77 = scmp.eq.s32.totalorder %s30, 0
      %p78 = por %p76, %p77
      %s79 = ssub.s32 %s24, %s31
      %p80 = scmp.eq.s32.totalorder %s79, 0
      %s82 = sadd.s32 %s81, 1
      %s83 = scalar_select %p80, %s81, %s82
      %p86 = pneg %p80
      %p87 = scmp.eq.s32.totalorder %s24, 1
      %p88 = por %p86, %p87
      %p89 = scmp.ne.s32.totalorder %s81, %s84
      %p90 = scmp.eq.s32.totalorder %s24, 0
      %p91 = por %p89, %p90
      %p92 = scmp.ne.s32.totalorder %s81, %s84
      %p93 = scmp.eq.s32.totalorder %s29, 1
      %p94 = por %p92, %p93
      %p95 = scmp.ne.s32.totalorder %s84, %s85
      %p96 = scmp.eq.s32.totalorder %s29, 0
      %p97 = por %p95, %p96
      %p98 = scmp.ne.s32.totalorder %s84, %s85
      %p99 = scmp.eq.s32.totalorder %s30, 1
      %p100 = por %p98, %p99
      %p102 = scmp.ne.s32.totalorder %s85, %s101
      %p103 = scmp.eq.s32.totalorder %s30, 0
      %p104 = por %p102, %p103
      %s105 = ssub.s32 %s24, %s31
      %p106 = scmp.eq.s32.totalorder %s105, 0
      %s108 = sadd.s32 %s107, 1
      %s109 = scalar_select %p106, %s107, %s108
      %p112 = pneg %p106
      %p113 = scmp.eq.s32.totalorder %s24, 1
      %p114 = por %p112, %p113
      %p115 = scmp.ne.s32.totalorder %s107, %s110
      %p116 = scmp.eq.s32.totalorder %s24, 0
      %p117 = por %p115, %p116
      %p118 = scmp.ne.s32.totalorder %s107, %s110
      %p119 = scmp.eq.s32.totalorder %s29, 1
      %p120 = por %p118, %p119
      %p121 = scmp.ne.s32.totalorder %s110, %s111
      %p122 = scmp.eq.s32.totalorder %s29, 0
      %p123 = por %p121, %p122
      %p124 = scmp.ne.s32.totalorder %s110, %s111
      %p125 = scmp.eq.s32.totalorder %s30, 1
      %p126 = por %p124, %p125
      %p128 = scmp.ne.s32.totalorder %s111, %s127
      %p129 = scmp.eq.s32.totalorder %s30, 0
      %p130 = por %p128, %p129
      %s131 = ssub.s32 %s24, %s31
      %p132 = scmp.eq.s32.totalorder %s131, 0
      %s134 = sadd.s32 %s133, 1
      %s135 = scalar_select %p132, %s133, %s134
      %p138 = pneg %p132
      %p139 = scmp.eq.s32.totalorder %s24, 1
      %p140 = por %p138, %p139
      %p141 = scmp.ne.s32.totalorder %s133, %s136
      %p142 = scmp.eq.s32.totalorder %s24, 0
      %p143 = por %p141, %p142
      %p144 = scmp.ne.s32.totalorder %s133, %s136
      %p145 = scmp.eq.s32.totalorder %s29, 1
      %p146 = por %p144, %p145
      %p147 = scmp.ne.s32.totalorder %s136, %s137
      %p148 = scmp.eq.s32.totalorder %s29, 0
      %p149 = por %p147, %p148
      %p150 = scmp.ne.s32.totalorder %s136, %s137
      %p151 = scmp.eq.s32.totalorder %s30, 1
      %p152 = por %p150, %p151
      %p154 = scmp.ne.s32.totalorder %s137, %s153
      %p155 = scmp.eq.s32.totalorder %s30, 0
      %p156 = por %p154, %p155
      %s158 = sadd.s32 %s157, 1
      %p161 = scmp.eq.s32.totalorder %s24, 1
      %p162 = scmp.ne.s32.totalorder %s157, %s159
      %p163 = scmp.eq.s32.totalorder %s24, 0
      %p164 = por %p162, %p163
      %p165 = scmp.ne.s32.totalorder %s157, %s159
      %p166 = scmp.eq.s32.totalorder %s29, 1
      %p167 = por %p165, %p166
      %p168 = scmp.ne.s32.totalorder %s159, %s160
      %p169 = scmp.eq.s32.totalorder %s29, 0
      %p170 = por %p168, %p169
      %p171 = scmp.ne.s32.totalorder %s159, %s160
      %p172 = scmp.eq.s32.totalorder %s30, 1
      %p173 = por %p171, %p172
      %p175 = scmp.ne.s32.totalorder %s160, %s174
      %p176 = scmp.eq.s32.totalorder %s30, 0
      %p177 = por %p175, %p176
      %s178 = ssub.s32 %s24, %s31
      %p179 = scmp.eq.s32.totalorder %s178, 0
      %s181 = sadd.s32 %s180, 1
      %s182 = scalar_select %p179, %s180, %s181
      %p185 = pneg %p179
      %p186 = scmp.eq.s32.totalorder %s24, 1
      %p187 = por %p185, %p186
      %p188 = scmp.ne.s32.totalorder %s180, %s183
      %p189 = scmp.eq.s32.totalorder %s24, 0
      %p190 = por %p188, %p189
      %p191 = scmp.ne.s32.totalorder %s180, %s183
      %p192 = scmp.eq.s32.totalorder %s29, 1
      %p193 = por %p191, %p192
      %p194 = scmp.ne.s32.totalorder %s183, %s184
      %p195 = scmp.eq.s32.totalorder %s29, 0
      %p196 = por %p194, %p195
      %p197 = scmp.ne.s32.totalorder %s183, %s184
      %p198 = scmp.eq.s32.totalorder %s30, 1
      %p199 = por %p197, %p198
      %p201 = scmp.ne.s32.totalorder %s184, %s200
      %p202 = scmp.eq.s32.totalorder %s30, 0
      %p203 = por %p201, %p202
      %p204 = scmp.le.s32.totalorder 1, %s24
      %p205 = scmp.lt.s32.totalorder %s24, 3
      %p206 = pnand %p204, %p205
      %p207 = pneg %p206
      // Predicated region
      $region9: #{tpu_custom_call.1} parent=5 // pred_check
        _
      $region10: #{tpu_custom_call.1} parent=5 // pred_check_branch
        %209 = sbr.rel (%p206) target = $region12
      $region11: #{tpu_custom_call.1} parent=5 // pred_region
        %s210 = ssub.s32 %s24, 1
        // Predicated region
        $region13: #{tpu_custom_call.1} parent=11 // pred_check
          %p211 = pneg %p45
        $region14: #{tpu_custom_call.1} parent=11 // pred_check_branch
          %213 = sbr.rel (%p211) target = $region16
        $region15: #{tpu_custom_call.1} parent=11 // pred_region
          %s215 = ssub.s32 1024, 1024
          %216 = vsyncadd [#allocation4], %s215
          %s217 = sshll.u32 [#allocation3], 4
          %s218 = int_to_ptr.vmem [resolvable:$true] %s217
          %223 = dma.hbm_to_vmem [thread:$0]  %s0, 1024, %s218, [#allocation4], 128, 128, 8
        $region16: #{tpu_custom_call.1} parent=11 // pred_fallthru
          _
      $region12: #{tpu_custom_call.1} parent=5 // pred_fallthru
        _
      %p224 = scmp.lt.s32.totalorder %s24, 2
      // Predicated region
      $region17: #{tpu_custom_call.1} parent=5 // pred_check
        %p225 = pneg %p224
      $region18: #{tpu_custom_call.1} parent=5 // pred_check_branch
        %227 = sbr.rel (%p225) target = $region20
      $region19: #{tpu_custom_call.1} parent=5 // pred_region
        // Predicated region
        $region21: #{tpu_custom_call.1} parent=19 // pred_check
          %p228 = pneg %p65
        $region22: #{tpu_custom_call.1} parent=19 // pred_check_branch
          %230 = sbr.rel (%p228) target = $region24
        $region23: #{tpu_custom_call.1} parent=19 // pred_region
          %s231 = sand.u32 %s24, 1
          %s232 = scalar_lea.sflag [#allocation7], %s231
          %s233 = sand.u32 %s55, 1
          %s234 = smul.addr %s233, 384
          %s235 = scalar_lea.vmem [#allocation6], %s234
          %s237 = ssub.s32 6144, 6144
          %238 = vsyncadd %s232, %s237
          %s239 = smul.addr %s24, 48
          %s240 = smul.addr %s239, 128
          %s241 = scalar_lea.hbm %s1, %s240
          %s242 = sshll.u32 %s235, 4
          %s243 = int_to_ptr.vmem [resolvable:$true] %s242
          %248 = dma.hbm_to_vmem [thread:$0]  %s241, 6144, %s243, %s232, 384, 384, 24
        $region24: #{tpu_custom_call.1} parent=19 // pred_fallthru
          _
        // Predicated region
        $region25: #{tpu_custom_call.1} parent=19 // pred_check
          %p249 = pneg %p91
        $region26: #{tpu_custom_call.1} parent=19 // pred_check_branch
          %251 = sbr.rel (%p249) target = $region28
        $region27: #{tpu_custom_call.1} parent=19 // pred_region
          %s252 = sand.u32 %s24, 1
          %s253 = scalar_lea.sflag [#allocation7], %s252
          %s254 = sand.u32 %s81, 1
          %s255 = smul.addr %s254, 384
          %s256 = scalar_lea.vmem [#allocation8], %s255
          %s258 = ssub.s32 6144, 6144
          %259 = vsyncadd %s253, %s258
          %s260 = smul.addr %s24, 48
          %s261 = smul.addr %s260, 128
          %s262 = scalar_lea.hbm %s2, %s261
          %s263 = sshll.u32 %s256, 4
          %s264 = int_to_ptr.vmem [resolvable:$true] %s263
          %269 = dma.hbm_to_vmem [thread:$0]  %s262, 6144, %s264, %s253, 384, 384, 24
        $region28: #{tpu_custom_call.1} parent=19 // pred_fallthru
          _
        // Predicated region
        $region29: #{tpu_custom_call.1} parent=19 // pred_check
          %p270 = pneg %p117
        $region30: #{tpu_custom_call.1} parent=19 // pred_check_branch
          %272 = sbr.rel (%p270) target = $region32
        $region31: #{tpu_custom_call.1} parent=19 // pred_region
          %s273 = sand.u32 %s107, 1
          %s274 = scalar_lea.sflag [#allocation10], %s273
          %s275 = sand.u32 %s107, 1
          %s276 = smul.addr %s275, 3
          %s277 = scalar_lea.vmem [#allocation9], %s276
          %s279 = ssub.s32 48, 48
          %280 = vsyncadd %s274, %s279
          %s281 = smul.addr %s24, 3
          %s282 = smul.addr %s281, 16
          %s283 = scalar_lea.hbm %s3, %s282
          %s285 = sshll.u32 %s277, 4
          %s286 = int_to_ptr.vmem [resolvable:$true] %s285
          %288 = dma.hbm_to_vmem [thread:$0]  %s283, 48, %s286, %s274
        $region32: #{tpu_custom_call.1} parent=19 // pred_fallthru
          _
        // Predicated region
        $region33: #{tpu_custom_call.1} parent=19 // pred_check
          %p289 = pneg %p143
        $region34: #{tpu_custom_call.1} parent=19 // pred_check_branch
          %291 = sbr.rel (%p289) target = $region36
        $region35: #{tpu_custom_call.1} parent=19 // pred_region
          %p292 = scmp.lt.s32.totalorder %s24, 1
          %s293 = scalar_select %p292, %s24, 1
          %s294 = scalar_lea.vmem %s4, %s293
        $region36: #{tpu_custom_call.1} parent=19 // pred_fallthru
          _
      $region20: #{tpu_custom_call.1} parent=5 // pred_fallthru
        _
      %p295 = scmp.le.s32.totalorder 1, %s24
      %p296 = scmp.lt.s32.totalorder %s24, 3
      %p297 = pnand %p295, %p296
      %p298 = pneg %p297
      // Predicated region
      $region37: #{tpu_custom_call.1} parent=5 // pred_check
        _
      $region38: #{tpu_custom_call.1} parent=5 // pred_check_branch
        %300 = sbr.rel (%p297) target = $region40
      $region39: #{tpu_custom_call.1} parent=5 // pred_region
        %s301 = ssub.s32 %s24, 1
        // Predicated region
        $region41: #{tpu_custom_call.1} parent=39 // pred_check
          %p302 = pneg %p45
        $region42: #{tpu_custom_call.1} parent=39 // pred_check_branch
          %304 = sbr.rel (%p302) target = $region44
        $region43: #{tpu_custom_call.1} parent=39 // pred_region
          %305 = dma.done [#allocation4], 1024
        $region44: #{tpu_custom_call.1} parent=39 // pred_fallthru
          _
        %s306 = sand.u32 %s29, 1
        %s307 = scalar_lea.sflag [#allocation7], %s306
        %s308 = sand.u32 %s58, 1
        %s309 = smul.addr %s308, 384
        %s310 = scalar_lea.vmem [#allocation6], %s309
        // Predicated region
        $region45: #{tpu_custom_call.1} parent=39 // pred_check
          %p311 = pneg %p71
        $region46: #{tpu_custom_call.1} parent=39 // pred_check_branch
          %313 = sbr.rel (%p311) target = $region48
        $region47: #{tpu_custom_call.1} parent=39 // pred_region
          %314 = dma.done %s307, 6144
        $region48: #{tpu_custom_call.1} parent=39 // pred_fallthru
          _
        %s315 = sand.u32 %s29, 1
        %s316 = scalar_lea.sflag [#allocation7], %s315
        %s317 = sand.u32 %s84, 1
        %s318 = smul.addr %s317, 384
        %s319 = scalar_lea.vmem [#allocation8], %s318
        // Predicated region
        $region49: #{tpu_custom_call.1} parent=39 // pred_check
          %p320 = pneg %p97
        $region50: #{tpu_custom_call.1} parent=39 // pred_check_branch
          %322 = sbr.rel (%p320) target = $region52
        $region51: #{tpu_custom_call.1} parent=39 // pred_region
          %323 = dma.done %s316, 6144
        $region52: #{tpu_custom_call.1} parent=39 // pred_fallthru
          _
        %s324 = sand.u32 %s110, 1
        %s325 = scalar_lea.sflag [#allocation10], %s324
        %s326 = sand.u32 %s110, 1
        %s327 = smul.addr %s326, 3
        %s328 = scalar_lea.vmem [#allocation9], %s327
        // Predicated region
        $region53: #{tpu_custom_call.1} parent=39 // pred_check
          %p329 = pneg %p123
        $region54: #{tpu_custom_call.1} parent=39 // pred_check_branch
          %331 = sbr.rel (%p329) target = $region56
        $region55: #{tpu_custom_call.1} parent=39 // pred_region
          %332 = dma.done %s325, 48
        $region56: #{tpu_custom_call.1} parent=39 // pred_fallthru
          _
        %p333 = pneg %p45
        %p334 = pneg %p42
        %s335 = sand.u32 %s29, 1
        %s336 = scalar_lea.sflag [#allocation7], %s335
        %s337 = sand.u32 %s58, 1
        %s338 = smul.addr %s337, 384
        %s339 = scalar_lea.vmem [#allocation6], %s338
        %p340 = pneg %p71
        %p341 = pneg %p68
        %s342 = sand.u32 %s29, 1
        %s343 = scalar_lea.sflag [#allocation7], %s342
        %s344 = sand.u32 %s84, 1
        %s345 = smul.addr %s344, 384
        %s346 = scalar_lea.vmem [#allocation8], %s345
        %p347 = pneg %p97
        %p348 = pneg %p94
        %s349 = sand.u32 %s110, 1
        %s350 = scalar_lea.sflag [#allocation10], %s349
        %s351 = sand.u32 %s110, 1
        %s352 = smul.addr %s351, 3
        %s353 = scalar_lea.vmem [#allocation9], %s352
        %p354 = pneg %p123
        %p355 = pneg %p120
        %p356 = scmp.lt.s32.totalorder %s29, 1
        %s357 = scalar_select %p356, %s29, 1
        %s358 = scalar_lea.vmem %s4, %s357
        %p359 = pneg %p149
        %p360 = pneg %p146
        %p361 = pneg %p170
        %p362 = pneg %p167
        %p363 = pneg %p196
        %p364 = pneg %p193
        %s365 = sand.u32 %s183, 1
        %s366 = scalar_lea.sflag [#allocation13], %s365
        %s367 = sand.u32 %s183, 1
        %s368 = smul.addr %s367, 8
        %s369 = scalar_lea.vmem [#allocation12], %s368
        %p370 = scmp.lt.s32.totalorder %s29, 1
        %s371 = scalar_select %p370, %s29, 1
        %s372 = scalar_lea.vmem %s4, %s371
        %v373 = vld [vmem:[%s310] sm:$0xff]
        %v374 = vld [vmem:[%s310 + $0x8] sm:$0xff]
        %v375 = vld [vmem:[%s310 + $0x10] sm:$0xff]
        %v376 = vld [vmem:[%s310 + $0x18] sm:$0xff]
        %v377 = vld [vmem:[%s310 + $0x20] sm:$0xff]
        %v378 = vld [vmem:[%s310 + $0x28] sm:$0xff]
        %v379 = vld [vmem:[%s310 + $0x30] sm:$0xff]
        %v380 = vld [vmem:[%s310 + $0x38] sm:$0xff]
        %v381 = vld [vmem:[%s310 + $0x40] sm:$0xff]
        %v382 = vld [vmem:[%s310 + $0x48] sm:$0xff]
        %v383 = vld [vmem:[%s310 + $0x50] sm:$0xff]
        %v384 = vld [vmem:[%s310 + $0x58] sm:$0xff]
        %v385 = vld [vmem:[%s310 + $0x60] sm:$0xff]
        %v386 = vld [vmem:[%s310 + $0x68] sm:$0xff]
        %v387 = vld [vmem:[%s310 + $0x70] sm:$0xff]
        %v388 = vld [vmem:[%s310 + $0x78] sm:$0xff]
        %v389 = vld [vmem:[%s310 + $0x80] sm:$0xff]
        %v390 = vld [vmem:[%s310 + $0x88] sm:$0xff]
        %v391 = vld [vmem:[%s310 + $0x90] sm:$0xff]
        %v392 = vld [vmem:[%s310 + $0x98] sm:$0xff]
        %v393 = vld [vmem:[%s310 + $0xa0] sm:$0xff]
        %v394 = vld [vmem:[%s310 + $0xa8] sm:$0xff]
        %v395 = vld [vmem:[%s310 + $0xb0] sm:$0xff]
        %v396 = vld [vmem:[%s310 + $0xb8] sm:$0xff]
        %v397 = vld [vmem:[%s310 + $0xc0] sm:$0xff]
        %v398 = vld [vmem:[%s310 + $0xc8] sm:$0xff]
        %v399 = vld [vmem:[%s310 + $0xd0] sm:$0xff]
        %v400 = vld [vmem:[%s310 + $0xd8] sm:$0xff]
        %v401 = vld [vmem:[%s310 + $0xe0] sm:$0xff]
        %v402 = vld [vmem:[%s310 + $0xe8] sm:$0xff]
        %v403 = vld [vmem:[%s310 + $0xf0] sm:$0xff]
        %v404 = vld [vmem:[%s310 + $0xf8] sm:$0xff]
        %v405 = vld [vmem:[%s310 + $0x100] sm:$0xff]
        %v406 = vld [vmem:[%s310 + $0x108] sm:$0xff]
        %v407 = vld [vmem:[%s310 + $0x110] sm:$0xff]
        %v408 = vld [vmem:[%s310 + $0x118] sm:$0xff]
        %v409 = vld [vmem:[%s310 + $0x120] sm:$0xff]
        %v410 = vld [vmem:[%s310 + $0x128] sm:$0xff]
        %v411 = vld [vmem:[%s310 + $0x130] sm:$0xff]
        %v412 = vld [vmem:[%s310 + $0x138] sm:$0xff]
        %v413 = vld [vmem:[%s310 + $0x140] sm:$0xff]
        %v414 = vld [vmem:[%s310 + $0x148] sm:$0xff]
        %v415 = vld [vmem:[%s310 + $0x150] sm:$0xff]
        %v416 = vld [vmem:[%s310 + $0x158] sm:$0xff]
        %v417 = vld [vmem:[%s310 + $0x160] sm:$0xff]
        %v418 = vld [vmem:[%s310 + $0x168] sm:$0xff]
        %v419 = vld [vmem:[%s310 + $0x170] sm:$0xff]
        %v420 = vld [vmem:[%s310 + $0x178] sm:$0xff]
        %v421 = vld [vmem:[%s319] sm:$0xff]
        %v422 = vld [vmem:[%s319 + $0x8] sm:$0xff]
        %v423 = vld [vmem:[%s319 + $0x10] sm:$0xff]
        %v424 = vld [vmem:[%s319 + $0x18] sm:$0xff]
        %v425 = vld [vmem:[%s319 + $0x20] sm:$0xff]
        %v426 = vld [vmem:[%s319 + $0x28] sm:$0xff]
        %v427 = vld [vmem:[%s319 + $0x30] sm:$0xff]
        %v428 = vld [vmem:[%s319 + $0x38] sm:$0xff]
        %v429 = vld [vmem:[%s319 + $0x40] sm:$0xff]
        %v430 = vld [vmem:[%s319 + $0x48] sm:$0xff]
        %v431 = vld [vmem:[%s319 + $0x50] sm:$0xff]
        %v432 = vld [vmem:[%s319 + $0x58] sm:$0xff]
        %v433 = vld [vmem:[%s319 + $0x60] sm:$0xff]
        %v434 = vld [vmem:[%s319 + $0x68] sm:$0xff]
        %v435 = vld [vmem:[%s319 + $0x70] sm:$0xff]
        %v436 = vld [vmem:[%s319 + $0x78] sm:$0xff]
        %v437 = vld [vmem:[%s319 + $0x80] sm:$0xff]
        %v438 = vld [vmem:[%s319 + $0x88] sm:$0xff]
        %v439 = vld [vmem:[%s319 + $0x90] sm:$0xff]
        %v440 = vld [vmem:[%s319 + $0x98] sm:$0xff]
        %v441 = vld [vmem:[%s319 + $0xa0] sm:$0xff]
        %v442 = vld [vmem:[%s319 + $0xa8] sm:$0xff]
        %v443 = vld [vmem:[%s319 + $0xb0] sm:$0xff]
        %v444 = vld [vmem:[%s319 + $0xb8] sm:$0xff]
        %v445 = vld [vmem:[%s319 + $0xc0] sm:$0xff]
        %v446 = vld [vmem:[%s319 + $0xc8] sm:$0xff]
        %v447 = vld [vmem:[%s319 + $0xd0] sm:$0xff]
        %v448 = vld [vmem:[%s319 + $0xd8] sm:$0xff]
        %v449 = vld [vmem:[%s319 + $0xe0] sm:$0xff]
        %v450 = vld [vmem:[%s319 + $0xe8] sm:$0xff]
        %v451 = vld [vmem:[%s319 + $0xf0] sm:$0xff]
        %v452 = vld [vmem:[%s319 + $0xf8] sm:$0xff]
        %v453 = vld [vmem:[%s319 + $0x100] sm:$0xff]
        %v454 = vld [vmem:[%s319 + $0x108] sm:$0xff]
        %v455 = vld [vmem:[%s319 + $0x110] sm:$0xff]
        %v456 = vld [vmem:[%s319 + $0x118] sm:$0xff]
        %v457 = vld [vmem:[%s319 + $0x120] sm:$0xff]
        %v458 = vld [vmem:[%s319 + $0x128] sm:$0xff]
        %v459 = vld [vmem:[%s319 + $0x130] sm:$0xff]
        %v460 = vld [vmem:[%s319 + $0x138] sm:$0xff]
        %v461 = vld [vmem:[%s319 + $0x140] sm:$0xff]
        %v462 = vld [vmem:[%s319 + $0x148] sm:$0xff]
        %v463 = vld [vmem:[%s319 + $0x150] sm:$0xff]
        %v464 = vld [vmem:[%s319 + $0x158] sm:$0xff]
        %v465 = vld [vmem:[%s319 + $0x160] sm:$0xff]
        %v466 = vld [vmem:[%s319 + $0x168] sm:$0xff]
        %v467 = vld [vmem:[%s319 + $0x170] sm:$0xff]
        %v468 = vld [vmem:[%s319 + $0x178] sm:$0xff]
        %v469 = vld [vmem:[%s328] sm:$0x7]
        %v470 = vld [vmem:[%s372] sm:$0x1]
        %v472 = vlaneseq
        %v473 = vshrl.u32 %v472, 7
        %v474 = vsub.s32 0, %v473
        %v475 = vrot.slane %v470, %v474
        %p477 = scmp.eq.s32.totalorder %s29, 0
        // Predicated region
        $region57: #{tpu_custom_call.1} parent=39 // pred_check
          %p478 = pneg %p477
        $region58: #{tpu_custom_call.1} parent=39 // pred_check_branch
          %480 = sbr.rel (%p478) target = $region60
        $region59: #{tpu_custom_call.1} parent=39 // pred_region
          %v481 = vld [vmem:[#allocation3] sm:$0xff]
          %v482 = vld [vmem:[#allocation3 + $0x8] sm:$0xff]
          %v483 = vld [vmem:[#allocation3 + $0x10] sm:$0xff]
          %v484 = vld [vmem:[#allocation3 + $0x18] sm:$0xff]
          %v485 = vld [vmem:[#allocation3 + $0x20] sm:$0xff]
          %v486 = vld [vmem:[#allocation3 + $0x28] sm:$0xff]
          %v487 = vld [vmem:[#allocation3 + $0x30] sm:$0xff]
          %v488 = vld [vmem:[#allocation3 + $0x38] sm:$0xff]
          %v490 = vlaneseq
          %v491 = vshrl.u32 %v490, 7
          %v492 = vsub.s32 0, %v491
          %v493 = vrot.slane %v469, %v492
          %v494 = vlaneseq
          %v495 = vshrl.u32 %v494, 7
          %v496 = vsub.s32 1, %v495
          %v497 = vrot.slane %v469, %v496
          %v498 = vlaneseq
          %v499 = vshrl.u32 %v498, 7
          %v500 = vsub.s32 2, %v499
          %v501 = vrot.slane %v469, %v500
          %505 = vmatprep.subr.mxu0 %v419
          %506 = vmatpush1.msra.mxu0 %v418
          %507 = vmatprep.subr.mxu0 %v416
          %508 = vmatpush1.msra.mxu0 %v415
          %509 = vmatprep.subr.mxu0 %v413
          %510 = vmatpush1.msra.mxu0 %v412
          %511 = vmatprep.subr.mxu0 %v410
          %512 = vmatpush1.msra.mxu0 %v409
          %513 = vmatprep.subr.mxu0 %v407
          %514 = vmatpush1.msra.mxu0 %v406
          %515 = vmatprep.subr.mxu0 %v404
          %516 = vmatpush1.msra.mxu0 %v403
          %517 = vmatprep.subr.mxu0 %v401
          %518 = vmatpush1.msra.mxu0 %v400
          %519 = vmatprep.subr.mxu0 %v398
          %520 = vmatpush1.msra.mxu0 %v397
          %521 = vmatprep.subr.mxu0 %v395
          %522 = vmatpush1.msra.mxu0 %v394
          %523 = vmatprep.subr.mxu0 %v392
          %524 = vmatpush1.msra.mxu0 %v391
          %525 = vmatprep.subr.mxu0 %v389
          %526 = vmatpush1.msra.mxu0 %v388
          %527 = vmatprep.subr.mxu0 %v386
          %528 = vmatpush1.msra.mxu0 %v385
          %529 = vmatprep.subr.mxu0 %v383
          %530 = vmatpush1.msra.mxu0 %v382
          %531 = vmatprep.subr.mxu0 %v380
          %532 = vmatpush1.msra.mxu0 %v379
          %533 = vmatprep.subr.mxu0 %v377
          %534 = vmatpush1.msra.mxu0 %v376
          %535 = vmatprep.subr.mxu0 %v374
          %536 = vmatpush1.msra.mxu0 %v373
          %537 = vmatprep.subr.mxu0 0.0
          %538 = vmatpush2.msra.mxu0 0.0
          %539 = vmatprep.subr.mxu0 0.0
          %540 = vmatpush2.msra.mxu0 0.0
          %541 = vmatprep.subr.mxu0 0.0
          %542 = vmatpush2.msra.mxu0 0.0
          %543 = vmatprep.subr.mxu0 0.0
          %544 = vmatpush2.msra.mxu0 0.0
          %545 = vmatprep.subr.mxu0 0.0
          %546 = vmatpush2.msra.mxu0 0.0
          %547 = vmatprep.subr.mxu0 0.0
          %548 = vmatpush2.msra.mxu0 0.0
          %549 = vmatprep.subr.mxu0 0.0
          %550 = vmatpush2.msra.mxu0 0.0
          %551 = vmatprep.subr.mxu0 0.0
          %552 = vmatpush2.msra.mxu0 0.0
          %553 = vmatprep.subr.mxu0 0.0
          %554 = vmatpush2.msra.mxu0 0.0
          %555 = vmatprep.subr.mxu0 0.0
          %556 = vmatpush2.msra.mxu0 0.0
          %557 = vmatprep.subr.mxu0 0.0
          %558 = vmatpush2.msra.mxu0 0.0
          %559 = vmatprep.subr.mxu0 0.0
          %560 = vmatpush2.msra.mxu0 0.0
          %561 = vmatprep.subr.mxu0 0.0
          %562 = vmatpush2.msra.mxu0 0.0
          %563 = vmatprep.subr.mxu0 0.0
          %564 = vmatpush2.msra.mxu0 0.0
          %565 = vmatprep.subr.mxu0 0.0
          %566 = vmatpush2.msra.mxu0 0.0
          %567 = vmatprep.subr.mxu0 0.0
          %568 = vmatpush2.msra.mxu0 0.0
          %569 = vmatprep.mubr.f32.mxu0 0.0
          %570 = vmatmul.mubr.f32.gmra.mxu0 %v481
          %v571 = vpop.f32.mrf.mxu0
          %v572 = vadd.f32 %v493, %v571
          %v573 = vpop.f32.mrf.mxu0
          %v574 = vadd.f32 %v497, %v573
          %575 = vmatprep.mubr.f32.mxu0 0.0
          %576 = vmatmul.mubr.f32.gmra.mxu0 %v482
          %v577 = vpop.f32.mrf.mxu0
          %v578 = vadd.f32 %v493, %v577
          %v579 = vpop.f32.mrf.mxu0
          %v580 = vadd.f32 %v497, %v579
          %581 = vmatprep.mubr.f32.mxu0 0.0
          %582 = vmatmul.mubr.f32.gmra.mxu0 %v483
          %v583 = vpop.f32.mrf.mxu0
          %v584 = vadd.f32 %v493, %v583
          %v585 = vpop.f32.mrf.mxu0
          %v586 = vadd.f32 %v497, %v585
          %587 = vmatprep.mubr.f32.mxu0 0.0
          %588 = vmatmul.mubr.f32.gmra.mxu0 %v484
          %v589 = vpop.f32.mrf.mxu0
          %v590 = vadd.f32 %v493, %v589
          %v591 = vpop.f32.mrf.mxu0
          %v592 = vadd.f32 %v497, %v591
          %593 = vmatprep.mubr.f32.mxu0 0.0
          %594 = vmatmul.mubr.f32.gmra.mxu0 %v485
          %v595 = vpop.f32.mrf.mxu0
          %v596 = vadd.f32 %v493, %v595
          %v597 = vpop.f32.mrf.mxu0
          %v598 = vadd.f32 %v497, %v597
          %599 = vmatprep.mubr.f32.mxu0 0.0
          %600 = vmatmul.mubr.f32.gmra.mxu0 %v486
          %v601 = vpop.f32.mrf.mxu0
          %v602 = vadd.f32 %v493, %v601
          %v603 = vpop.f32.mrf.mxu0
          %v604 = vadd.f32 %v497, %v603
          %605 = vmatprep.mubr.f32.mxu0 0.0
          %606 = vmatmul.mubr.f32.gmra.mxu0 %v487
          %v607 = vpop.f32.mrf.mxu0
          %v608 = vadd.f32 %v493, %v607
          %v609 = vpop.f32.mrf.mxu0
          %v610 = vadd.f32 %v497, %v609
          %611 = vmatprep.mubr.f32.mxu0 0.0
          %612 = vmatmul.mubr.f32.gmra.mxu0 %v488
          %v613 = vpop.f32.mrf.mxu0
          %v614 = vadd.f32 %v493, %v613
          %v615 = vpop.f32.mrf.mxu0
          %v616 = vadd.f32 %v497, %v615
          %617 = vdwg.mxu0
          %618 = vmatprep.subr.mxu0 0.0
          %619 = vmatpush1.msra.mxu0 %v420
          %620 = vmatprep.subr.mxu0 0.0
          %621 = vmatpush1.msra.mxu0 %v417
          %622 = vmatprep.subr.mxu0 0.0
          %623 = vmatpush1.msra.mxu0 %v414
          %624 = vmatprep.subr.mxu0 0.0
          %625 = vmatpush1.msra.mxu0 %v411
          %626 = vmatprep.subr.mxu0 0.0
          %627 = vmatpush1.msra.mxu0 %v408
          %628 = vmatprep.subr.mxu0 0.0
          %629 = vmatpush1.msra.mxu0 %v405
          %630 = vmatprep.subr.mxu0 0.0
          %631 = vmatpush1.msra.mxu0 %v402
          %632 = vmatprep.subr.mxu0 0.0
          %633 = vmatpush1.msra.mxu0 %v399
          %634 = vmatprep.subr.mxu0 0.0
          %635 = vmatpush1.msra.mxu0 %v396
          %636 = vmatprep.subr.mxu0 0.0
          %637 = vmatpush1.msra.mxu0 %v393
          %638 = vmatprep.subr.mxu0 0.0
          %639 = vmatpush1.msra.mxu0 %v390
          %640 = vmatprep.subr.mxu0 0.0
          %641 = vmatpush1.msra.mxu0 %v387
          %642 = vmatprep.subr.mxu0 0.0
          %643 = vmatpush1.msra.mxu0 %v384
          %644 = vmatprep.subr.mxu0 0.0
          %645 = vmatpush1.msra.mxu0 %v381
          %646 = vmatprep.subr.mxu0 0.0
          %647 = vmatpush1.msra.mxu0 %v378
          %648 = vmatprep.subr.mxu0 0.0
          %649 = vmatpush1.msra.mxu0 %v375
          %650 = vmatprep.subr.mxu0 0.0
          %651 = vmatpush2.msra.mxu0 0.0
          %652 = vmatprep.subr.mxu0 0.0
          %653 = vmatpush2.msra.mxu0 0.0
          %654 = vmatprep.subr.mxu0 0.0
          %655 = vmatpush2.msra.mxu0 0.0
          %656 = vmatprep.subr.mxu0 0.0
          %657 = vmatpush2.msra.mxu0 0.0
          %658 = vmatprep.subr.mxu0 0.0
          %659 = vmatpush2.msra.mxu0 0.0
          %660 = vmatprep.subr.mxu0 0.0
          %661 = vmatpush2.msra.mxu0 0.0
          %662 = vmatprep.subr.mxu0 0.0
          %663 = vmatpush2.msra.mxu0 0.0
          %664 = vmatprep.subr.mxu0 0.0
          %665 = vmatpush2.msra.mxu0 0.0
          %666 = vmatprep.subr.mxu0 0.0
          %667 = vmatpush2.msra.mxu0 0.0
          %668 = vmatprep.subr.mxu0 0.0
          %669 = vmatpush2.msra.mxu0 0.0
          %670 = vmatprep.subr.mxu0 0.0
          %671 = vmatpush2.msra.mxu0 0.0
          %672 = vmatprep.subr.mxu0 0.0
          %673 = vmatpush2.msra.mxu0 0.0
          %674 = vmatprep.subr.mxu0 0.0
          %675 = vmatpush2.msra.mxu0 0.0
          %676 = vmatprep.subr.mxu0 0.0
          %677 = vmatpush2.msra.mxu0 0.0
          %678 = vmatprep.subr.mxu0 0.0
          %679 = vmatpush2.msra.mxu0 0.0
          %680 = vmatprep.subr.mxu0 0.0
          %681 = vmatpush2.msra.mxu0 0.0
          %682 = vmatprep.mubr.f32.mxu0 0.0
          %683 = vmatmul.mubr.f32.gmra.mxu0 %v481
          %v684 = vpop.f32.mrf.mxu0
          %v685 = vadd.f32 %v501, %v684
          %v686 = vpop.f32.mrf.mxu0
          %687 = vmatprep.mubr.f32.mxu0 0.0
          %688 = vmatmul.mubr.f32.gmra.mxu0 %v482
          %v689 = vpop.f32.mrf.mxu0
          %v690 = vadd.f32 %v501, %v689
          %v691 = vpop.f32.mrf.mxu0
          %692 = vmatprep.mubr.f32.mxu0 0.0
          %693 = vmatmul.mubr.f32.gmra.mxu0 %v483
          %v694 = vpop.f32.mrf.mxu0
          %v695 = vadd.f32 %v501, %v694
          %v696 = vpop.f32.mrf.mxu0
          %697 = vmatprep.mubr.f32.mxu0 0.0
          %698 = vmatmul.mubr.f32.gmra.mxu0 %v484
          %v699 = vpop.f32.mrf.mxu0
          %v700 = vadd.f32 %v501, %v699
          %v701 = vpop.f32.mrf.mxu0
          %702 = vmatprep.mubr.f32.mxu0 0.0
          %703 = vmatmul.mubr.f32.gmra.mxu0 %v485
          %v704 = vpop.f32.mrf.mxu0
          %v705 = vadd.f32 %v501, %v704
          %v706 = vpop.f32.mrf.mxu0
          %707 = vmatprep.mubr.f32.mxu0 0.0
          %708 = vmatmul.mubr.f32.gmra.mxu0 %v486
          %v709 = vpop.f32.mrf.mxu0
          %v710 = vadd.f32 %v501, %v709
          %v711 = vpop.f32.mrf.mxu0
          %712 = vmatprep.mubr.f32.mxu0 0.0
          %713 = vmatmul.mubr.f32.gmra.mxu0 %v487
          %v714 = vpop.f32.mrf.mxu0
          %v715 = vadd.f32 %v501, %v714
          %v716 = vpop.f32.mrf.mxu0
          %717 = vmatprep.mubr.f32.mxu0 0.0
          %718 = vmatmul.mubr.f32.gmra.mxu0 %v488
          %v719 = vpop.f32.mrf.mxu0
          %v720 = vadd.f32 %v501, %v719
          %v721 = vpop.f32.mrf.mxu0
          %722 = vdwg.mxu0
          %723 = vst [vmem:[#allocation2] sm:$0xff] %v572
          %724 = vst [vmem:[#allocation2 + $0x8] sm:$0xff] %v574
          %725 = vst [vmem:[#allocation2 + $0x10] sm:$0xff] %v685
          %726 = vst [vmem:[#allocation2 + $0x18] sm:$0xff] %v578
          %727 = vst [vmem:[#allocation2 + $0x20] sm:$0xff] %v580
          %728 = vst [vmem:[#allocation2 + $0x28] sm:$0xff] %v690
          %729 = vst [vmem:[#allocation2 + $0x30] sm:$0xff] %v584
          %730 = vst [vmem:[#allocation2 + $0x38] sm:$0xff] %v586
          %731 = vst [vmem:[#allocation2 + $0x40] sm:$0xff] %v695
          %732 = vst [vmem:[#allocation2 + $0x48] sm:$0xff] %v590
          %733 = vst [vmem:[#allocation2 + $0x50] sm:$0xff] %v592
          %734 = vst [vmem:[#allocation2 + $0x58] sm:$0xff] %v700
          %735 = vst [vmem:[#allocation2 + $0x60] sm:$0xff] %v596
          %736 = vst [vmem:[#allocation2 + $0x68] sm:$0xff] %v598
          %737 = vst [vmem:[#allocation2 + $0x70] sm:$0xff] %v705
          %738 = vst [vmem:[#allocation2 + $0x78] sm:$0xff] %v602
          %739 = vst [vmem:[#allocation2 + $0x80] sm:$0xff] %v604
          %740 = vst [vmem:[#allocation2 + $0x88] sm:$0xff] %v710
          %741 = vst [vmem:[#allocation2 + $0x90] sm:$0xff] %v608
          %742 = vst [vmem:[#allocation2 + $0x98] sm:$0xff] %v610
          %743 = vst [vmem:[#allocation2 + $0xa0] sm:$0xff] %v715
          %744 = vst [vmem:[#allocation2 + $0xa8] sm:$0xff] %v614
          %745 = vst [vmem:[#allocation2 + $0xb0] sm:$0xff] %v616
          %746 = vst [vmem:[#allocation2 + $0xb8] sm:$0xff] %v720
        $region60: #{tpu_custom_call.1} parent=39 // pred_fallthru
          _
        %p747 = scmp.ne.s32.totalorder %s29, 0
        // Predicated region
        $region61: #{tpu_custom_call.1} parent=39 // pred_check
          %p748 = pneg %p747
        $region62: #{tpu_custom_call.1} parent=39 // pred_check_branch
          %750 = sbr.rel (%p748) target = $region64
        $region63: #{tpu_custom_call.1} parent=39 // pred_region
          %v751 = vld [vmem:[#allocation11] sm:$0xff]
          %v752 = vld [vmem:[#allocation11 + $0x8] sm:$0xff]
          %v753 = vld [vmem:[#allocation11 + $0x10] sm:$0xff]
          %v754 = vld [vmem:[#allocation11 + $0x18] sm:$0xff]
          %v755 = vld [vmem:[#allocation11 + $0x20] sm:$0xff]
          %v756 = vld [vmem:[#allocation11 + $0x28] sm:$0xff]
          %v757 = vld [vmem:[#allocation11 + $0x30] sm:$0xff]
          %v758 = vld [vmem:[#allocation11 + $0x38] sm:$0xff]
          %v760 = vlaneseq
          %v761 = vshrl.u32 %v760, 7
          %v762 = vsub.s32 0, %v761
          %v763 = vrot.slane %v469, %v762
          %v764 = vlaneseq
          %v765 = vshrl.u32 %v764, 7
          %v766 = vsub.s32 1, %v765
          %v767 = vrot.slane %v469, %v766
          %v768 = vlaneseq
          %v769 = vshrl.u32 %v768, 7
          %v770 = vsub.s32 2, %v769
          %v771 = vrot.slane %v469, %v770
          %775 = vmatprep.subr.mxu0 %v419
          %776 = vmatpush1.msra.mxu0 %v418
          %777 = vmatprep.subr.mxu0 %v416
          %778 = vmatpush1.msra.mxu0 %v415
          %779 = vmatprep.subr.mxu0 %v413
          %780 = vmatpush1.msra.mxu0 %v412
          %781 = vmatprep.subr.mxu0 %v410
          %782 = vmatpush1.msra.mxu0 %v409
          %783 = vmatprep.subr.mxu0 %v407
          %784 = vmatpush1.msra.mxu0 %v406
          %785 = vmatprep.subr.mxu0 %v404
          %786 = vmatpush1.msra.mxu0 %v403
          %787 = vmatprep.subr.mxu0 %v401
          %788 = vmatpush1.msra.mxu0 %v400
          %789 = vmatprep.subr.mxu0 %v398
          %790 = vmatpush1.msra.mxu0 %v397
          %791 = vmatprep.subr.mxu0 %v395
          %792 = vmatpush1.msra.mxu0 %v394
          %793 = vmatprep.subr.mxu0 %v392
          %794 = vmatpush1.msra.mxu0 %v391
          %795 = vmatprep.subr.mxu0 %v389
          %796 = vmatpush1.msra.mxu0 %v388
          %797 = vmatprep.subr.mxu0 %v386
          %798 = vmatpush1.msra.mxu0 %v385
          %799 = vmatprep.subr.mxu0 %v383
          %800 = vmatpush1.msra.mxu0 %v382
          %801 = vmatprep.subr.mxu0 %v380
          %802 = vmatpush1.msra.mxu0 %v379
          %803 = vmatprep.subr.mxu0 %v377
          %804 = vmatpush1.msra.mxu0 %v376
          %805 = vmatprep.subr.mxu0 %v374
          %806 = vmatpush1.msra.mxu0 %v373
          %807 = vmatprep.subr.mxu0 0.0
          %808 = vmatpush2.msra.mxu0 0.0
          %809 = vmatprep.subr.mxu0 0.0
          %810 = vmatpush2.msra.mxu0 0.0
          %811 = vmatprep.subr.mxu0 0.0
          %812 = vmatpush2.msra.mxu0 0.0
          %813 = vmatprep.subr.mxu0 0.0
          %814 = vmatpush2.msra.mxu0 0.0
          %815 = vmatprep.subr.mxu0 0.0
          %816 = vmatpush2.msra.mxu0 0.0
          %817 = vmatprep.subr.mxu0 0.0
          %818 = vmatpush2.msra.mxu0 0.0
          %819 = vmatprep.subr.mxu0 0.0
          %820 = vmatpush2.msra.mxu0 0.0
          %821 = vmatprep.subr.mxu0 0.0
          %822 = vmatpush2.msra.mxu0 0.0
          %823 = vmatprep.subr.mxu0 0.0
          %824 = vmatpush2.msra.mxu0 0.0
          %825 = vmatprep.subr.mxu0 0.0
          %826 = vmatpush2.msra.mxu0 0.0
          %827 = vmatprep.subr.mxu0 0.0
          %828 = vmatpush2.msra.mxu0 0.0
          %829 = vmatprep.subr.mxu0 0.0
          %830 = vmatpush2.msra.mxu0 0.0
          %831 = vmatprep.subr.mxu0 0.0
          %832 = vmatpush2.msra.mxu0 0.0
          %833 = vmatprep.subr.mxu0 0.0
          %834 = vmatpush2.msra.mxu0 0.0
          %835 = vmatprep.subr.mxu0 0.0
          %836 = vmatpush2.msra.mxu0 0.0
          %837 = vmatprep.subr.mxu0 0.0
          %838 = vmatpush2.msra.mxu0 0.0
          %839 = vmatprep.mubr.f32.mxu0 0.0
          %840 = vmatmul.mubr.f32.gmra.mxu0 %v751
          %v841 = vpop.f32.mrf.mxu0
          %v842 = vadd.f32 %v763, %v841
          %v843 = vpop.f32.mrf.mxu0
          %v844 = vadd.f32 %v767, %v843
          %845 = vmatprep.mubr.f32.mxu0 0.0
          %846 = vmatmul.mubr.f32.gmra.mxu0 %v752
          %v847 = vpop.f32.mrf.mxu0
          %v848 = vadd.f32 %v763, %v847
          %v849 = vpop.f32.mrf.mxu0
          %v850 = vadd.f32 %v767, %v849
          %851 = vmatprep.mubr.f32.mxu0 0.0
          %852 = vmatmul.mubr.f32.gmra.mxu0 %v753
          %v853 = vpop.f32.mrf.mxu0
          %v854 = vadd.f32 %v763, %v853
          %v855 = vpop.f32.mrf.mxu0
          %v856 = vadd.f32 %v767, %v855
          %857 = vmatprep.mubr.f32.mxu0 0.0
          %858 = vmatmul.mubr.f32.gmra.mxu0 %v754
          %v859 = vpop.f32.mrf.mxu0
          %v860 = vadd.f32 %v763, %v859
          %v861 = vpop.f32.mrf.mxu0
          %v862 = vadd.f32 %v767, %v861
          %863 = vmatprep.mubr.f32.mxu0 0.0
          %864 = vmatmul.mubr.f32.gmra.mxu0 %v755
          %v865 = vpop.f32.mrf.mxu0
          %v866 = vadd.f32 %v763, %v865
          %v867 = vpop.f32.mrf.mxu0
          %v868 = vadd.f32 %v767, %v867
          %869 = vmatprep.mubr.f32.mxu0 0.0
          %870 = vmatmul.mubr.f32.gmra.mxu0 %v756
          %v871 = vpop.f32.mrf.mxu0
          %v872 = vadd.f32 %v763, %v871
          %v873 = vpop.f32.mrf.mxu0
          %v874 = vadd.f32 %v767, %v873
          %875 = vmatprep.mubr.f32.mxu0 0.0
          %876 = vmatmul.mubr.f32.gmra.mxu0 %v757
          %v877 = vpop.f32.mrf.mxu0
          %v878 = vadd.f32 %v763, %v877
          %v879 = vpop.f32.mrf.mxu0
          %v880 = vadd.f32 %v767, %v879
          %881 = vmatprep.mubr.f32.mxu0 0.0
          %882 = vmatmul.mubr.f32.gmra.mxu0 %v758
          %v883 = vpop.f32.mrf.mxu0
          %v884 = vadd.f32 %v763, %v883
          %v885 = vpop.f32.mrf.mxu0
          %v886 = vadd.f32 %v767, %v885
          %887 = vdwg.mxu0
          %888 = vmatprep.subr.mxu0 0.0
          %889 = vmatpush1.msra.mxu0 %v420
          %890 = vmatprep.subr.mxu0 0.0
          %891 = vmatpush1.msra.mxu0 %v417
          %892 = vmatprep.subr.mxu0 0.0
          %893 = vmatpush1.msra.mxu0 %v414
          %894 = vmatprep.subr.mxu0 0.0
          %895 = vmatpush1.msra.mxu0 %v411
          %896 = vmatprep.subr.mxu0 0.0
          %897 = vmatpush1.msra.mxu0 %v408
          %898 = vmatprep.subr.mxu0 0.0
          %899 = vmatpush1.msra.mxu0 %v405
          %900 = vmatprep.subr.mxu0 0.0
          %901 = vmatpush1.msra.mxu0 %v402
          %902 = vmatprep.subr.mxu0 0.0
          %903 = vmatpush1.msra.mxu0 %v399
          %904 = vmatprep.subr.mxu0 0.0
          %905 = vmatpush1.msra.mxu0 %v396
          %906 = vmatprep.subr.mxu0 0.0
          %907 = vmatpush1.msra.mxu0 %v393
          %908 = vmatprep.subr.mxu0 0.0
          %909 = vmatpush1.msra.mxu0 %v390
          %910 = vmatprep.subr.mxu0 0.0
          %911 = vmatpush1.msra.mxu0 %v387
          %912 = vmatprep.subr.mxu0 0.0
          %913 = vmatpush1.msra.mxu0 %v384
          %914 = vmatprep.subr.mxu0 0.0
          %915 = vmatpush1.msra.mxu0 %v381
          %916 = vmatprep.subr.mxu0 0.0
          %917 = vmatpush1.msra.mxu0 %v378
          %918 = vmatprep.subr.mxu0 0.0
          %919 = vmatpush1.msra.mxu0 %v375
          %920 = vmatprep.subr.mxu0 0.0
          %921 = vmatpush2.msra.mxu0 0.0
          %922 = vmatprep.subr.mxu0 0.0
          %923 = vmatpush2.msra.mxu0 0.0
          %924 = vmatprep.subr.mxu0 0.0
          %925 = vmatpush2.msra.mxu0 0.0
          %926 = vmatprep.subr.mxu0 0.0
          %927 = vmatpush2.msra.mxu0 0.0
          %928 = vmatprep.subr.mxu0 0.0
          %929 = vmatpush2.msra.mxu0 0.0
          %930 = vmatprep.subr.mxu0 0.0
          %931 = vmatpush2.msra.mxu0 0.0
          %932 = vmatprep.subr.mxu0 0.0
          %933 = vmatpush2.msra.mxu0 0.0
          %934 = vmatprep.subr.mxu0 0.0
          %935 = vmatpush2.msra.mxu0 0.0
          %936 = vmatprep.subr.mxu0 0.0
          %937 = vmatpush2.msra.mxu0 0.0
          %938 = vmatprep.subr.mxu0 0.0
          %939 = vmatpush2.msra.mxu0 0.0
          %940 = vmatprep.subr.mxu0 0.0
          %941 = vmatpush2.msra.mxu0 0.0
          %942 = vmatprep.subr.mxu0 0.0
          %943 = vmatpush2.msra.mxu0 0.0
          %944 = vmatprep.subr.mxu0 0.0
          %945 = vmatpush2.msra.mxu0 0.0
          %946 = vmatprep.subr.mxu0 0.0
          %947 = vmatpush2.msra.mxu0 0.0
          %948 = vmatprep.subr.mxu0 0.0
          %949 = vmatpush2.msra.mxu0 0.0
          %950 = vmatprep.subr.mxu0 0.0
          %951 = vmatpush2.msra.mxu0 0.0
          %952 = vmatprep.mubr.f32.mxu0 0.0
          %953 = vmatmul.mubr.f32.gmra.mxu0 %v751
          %v954 = vpop.f32.mrf.mxu0
          %v955 = vadd.f32 %v771, %v954
          %v956 = vpop.f32.mrf.mxu0
          %957 = vmatprep.mubr.f32.mxu0 0.0
          %958 = vmatmul.mubr.f32.gmra.mxu0 %v752
          %v959 = vpop.f32.mrf.mxu0
          %v960 = vadd.f32 %v771, %v959
          %v961 = vpop.f32.mrf.mxu0
          %962 = vmatprep.mubr.f32.mxu0 0.0
          %963 = vmatmul.mubr.f32.gmra.mxu0 %v753
          %v964 = vpop.f32.mrf.mxu0
          %v965 = vadd.f32 %v771, %v964
          %v966 = vpop.f32.mrf.mxu0
          %967 = vmatprep.mubr.f32.mxu0 0.0
          %968 = vmatmul.mubr.f32.gmra.mxu0 %v754
          %v969 = vpop.f32.mrf.mxu0
          %v970 = vadd.f32 %v771, %v969
          %v971 = vpop.f32.mrf.mxu0
          %972 = vmatprep.mubr.f32.mxu0 0.0
          %973 = vmatmul.mubr.f32.gmra.mxu0 %v755
          %v974 = vpop.f32.mrf.mxu0
          %v975 = vadd.f32 %v771, %v974
          %v976 = vpop.f32.mrf.mxu0
          %977 = vmatprep.mubr.f32.mxu0 0.0
          %978 = vmatmul.mubr.f32.gmra.mxu0 %v756
          %v979 = vpop.f32.mrf.mxu0
          %v980 = vadd.f32 %v771, %v979
          %v981 = vpop.f32.mrf.mxu0
          %982 = vmatprep.mubr.f32.mxu0 0.0
          %983 = vmatmul.mubr.f32.gmra.mxu0 %v757
          %v984 = vpop.f32.mrf.mxu0
          %v985 = vadd.f32 %v771, %v984
          %v986 = vpop.f32.mrf.mxu0
          %987 = vmatprep.mubr.f32.mxu0 0.0
          %988 = vmatmul.mubr.f32.gmra.mxu0 %v758
          %v989 = vpop.f32.mrf.mxu0
          %v990 = vadd.f32 %v771, %v989
          %v991 = vpop.f32.mrf.mxu0
          %992 = vdwg.mxu0
          %993 = vst [vmem:[#allocation2] sm:$0xff] %v842
          %994 = vst [vmem:[#allocation2 + $0x8] sm:$0xff] %v844
          %995 = vst [vmem:[#allocation2 + $0x10] sm:$0xff] %v955
          %996 = vst [vmem:[#allocation2 + $0x18] sm:$0xff] %v848
          %997 = vst [vmem:[#allocation2 + $0x20] sm:$0xff] %v850
          %998 = vst [vmem:[#allocation2 + $0x28] sm:$0xff] %v960
          %999 = vst [vmem:[#allocation2 + $0x30] sm:$0xff] %v854
          %1000 = vst [vmem:[#allocation2 + $0x38] sm:$0xff] %v856
          %1001 = vst [vmem:[#allocation2 + $0x40] sm:$0xff] %v965
          %1002 = vst [vmem:[#allocation2 + $0x48] sm:$0xff] %v860
          %1003 = vst [vmem:[#allocation2 + $0x50] sm:$0xff] %v862
          %1004 = vst [vmem:[#allocation2 + $0x58] sm:$0xff] %v970
          %1005 = vst [vmem:[#allocation2 + $0x60] sm:$0xff] %v866
          %1006 = vst [vmem:[#allocation2 + $0x68] sm:$0xff] %v868
          %1007 = vst [vmem:[#allocation2 + $0x70] sm:$0xff] %v975
          %1008 = vst [vmem:[#allocation2 + $0x78] sm:$0xff] %v872
          %1009 = vst [vmem:[#allocation2 + $0x80] sm:$0xff] %v874
          %1010 = vst [vmem:[#allocation2 + $0x88] sm:$0xff] %v980
          %1011 = vst [vmem:[#allocation2 + $0x90] sm:$0xff] %v878
          %1012 = vst [vmem:[#allocation2 + $0x98] sm:$0xff] %v880
          %1013 = vst [vmem:[#allocation2 + $0xa0] sm:$0xff] %v985
          %1014 = vst [vmem:[#allocation2 + $0xa8] sm:$0xff] %v884
          %1015 = vst [vmem:[#allocation2 + $0xb0] sm:$0xff] %v886
          %1016 = vst [vmem:[#allocation2 + $0xb8] sm:$0xff] %v990
        $region64: #{tpu_custom_call.1} parent=39 // pred_fallthru
          _
        %v1017 = vld [vmem:[#allocation2] sm:$0xff]
        %v1018 = vld [vmem:[#allocation2 + $0x8] sm:$0xff]
        %v1019 = vld [vmem:[#allocation2 + $0x10] sm:$0xff]
        %1020 = vmatprep.subr.mxu0 %v467
        %1021 = vmatpush1.msra.mxu0 %v466
        %1022 = vmatprep.subr.mxu0 %v464
        %1023 = vmatpush1.msra.mxu0 %v463
        %1024 = vmatprep.subr.mxu0 %v461
        %1025 = vmatpush1.msra.mxu0 %v460
        %1026 = vmatprep.subr.mxu0 %v458
        %1027 = vmatpush1.msra.mxu0 %v457
        %1028 = vmatprep.subr.mxu0 %v455
        %1029 = vmatpush1.msra.mxu0 %v454
        %1030 = vmatprep.subr.mxu0 %v452
        %1031 = vmatpush1.msra.mxu0 %v451
        %1032 = vmatprep.subr.mxu0 %v449
        %1033 = vmatpush1.msra.mxu0 %v448
        %1034 = vmatprep.subr.mxu0 %v446
        %1035 = vmatpush1.msra.mxu0 %v445
        %1036 = vmatprep.subr.mxu0 %v443
        %1037 = vmatpush1.msra.mxu0 %v442
        %1038 = vmatprep.subr.mxu0 %v440
        %1039 = vmatpush1.msra.mxu0 %v439
        %1040 = vmatprep.subr.mxu0 %v437
        %1041 = vmatpush1.msra.mxu0 %v436
        %1042 = vmatprep.subr.mxu0 %v434
        %1043 = vmatpush1.msra.mxu0 %v433
        %1044 = vmatprep.subr.mxu0 %v431
        %1045 = vmatpush1.msra.mxu0 %v430
        %1046 = vmatprep.subr.mxu0 %v428
        %1047 = vmatpush1.msra.mxu0 %v427
        %1048 = vmatprep.subr.mxu0 %v425
        %1049 = vmatpush1.msra.mxu0 %v424
        %1050 = vmatprep.subr.mxu0 %v422
        %1051 = vmatpush1.msra.mxu0 %v421
        %1052 = vmatprep.subr.mxu0 0.0
        %1053 = vmatpush2.msra.mxu0 0.0
        %1054 = vmatprep.subr.mxu0 0.0
        %1055 = vmatpush2.msra.mxu0 0.0
        %1056 = vmatprep.subr.mxu0 0.0
        %1057 = vmatpush2.msra.mxu0 0.0
        %1058 = vmatprep.subr.mxu0 0.0
        %1059 = vmatpush2.msra.mxu0 0.0
        %1060 = vmatprep.subr.mxu0 0.0
        %1061 = vmatpush2.msra.mxu0 0.0
        %1062 = vmatprep.subr.mxu0 0.0
        %1063 = vmatpush2.msra.mxu0 0.0
        %1064 = vmatprep.subr.mxu0 0.0
        %1065 = vmatpush2.msra.mxu0 0.0
        %1066 = vmatprep.subr.mxu0 0.0
        %1067 = vmatpush2.msra.mxu0 0.0
        %1068 = vmatprep.subr.mxu0 0.0
        %1069 = vmatpush2.msra.mxu0 0.0
        %1070 = vmatprep.subr.mxu0 0.0
        %1071 = vmatpush2.msra.mxu0 0.0
        %1072 = vmatprep.subr.mxu0 0.0
        %1073 = vmatpush2.msra.mxu0 0.0
        %1074 = vmatprep.subr.mxu0 0.0
        %1075 = vmatpush2.msra.mxu0 0.0
        %1076 = vmatprep.subr.mxu0 0.0
        %1077 = vmatpush2.msra.mxu0 0.0
        %1078 = vmatprep.subr.mxu0 0.0
        %1079 = vmatpush2.msra.mxu0 0.0
        %1080 = vmatprep.subr.mxu0 0.0
        %1081 = vmatpush2.msra.mxu0 0.0
        %1082 = vmatprep.subr.mxu0 0.0
        %1083 = vmatpush2.msra.mxu0 0.0
        %1084 = vmatprep.mubr.f32.mxu0 0.0
        %1085 = vmatmul.mubr.f32.gmra.mxu0 0.0
        %v1086 = vpop.f32.mrf.mxu0
        %v1087 = vadd.f32 0.0, %v1086
        %v1088 = vpop.f32.mrf.mxu0
        %v1089 = vadd.f32 0.0, %v1088
        %1090 = vdwg.mxu0
        %1091 = vmatprep.subr.mxu0 0.0
        %1092 = vmatpush1.msra.mxu0 %v468
        %1093 = vmatprep.subr.mxu0 0.0
        %1094 = vmatpush1.msra.mxu0 %v465
        %1095 = vmatprep.subr.mxu0 0.0
        %1096 = vmatpush1.msra.mxu0 %v462
        %1097 = vmatprep.subr.mxu0 0.0
        %1098 = vmatpush1.msra.mxu0 %v459
        %1099 = vmatprep.subr.mxu0 0.0
        %1100 = vmatpush1.msra.mxu0 %v456
        %1101 = vmatprep.subr.mxu0 0.0
        %1102 = vmatpush1.msra.mxu0 %v453
        %1103 = vmatprep.subr.mxu0 0.0
        %1104 = vmatpush1.msra.mxu0 %v450
        %1105 = vmatprep.subr.mxu0 0.0
        %1106 = vmatpush1.msra.mxu0 %v447
        %1107 = vmatprep.subr.mxu0 0.0
        %1108 = vmatpush1.msra.mxu0 %v444
        %1109 = vmatprep.subr.mxu0 0.0
        %1110 = vmatpush1.msra.mxu0 %v441
        %1111 = vmatprep.subr.mxu0 0.0
        %1112 = vmatpush1.msra.mxu0 %v438
        %1113 = vmatprep.subr.mxu0 0.0
        %1114 = vmatpush1.msra.mxu0 %v435
        %1115 = vmatprep.subr.mxu0 0.0
        %1116 = vmatpush1.msra.mxu0 %v432
        %1117 = vmatprep.subr.mxu0 0.0
        %1118 = vmatpush1.msra.mxu0 %v429
        %1119 = vmatprep.subr.mxu0 0.0
        %1120 = vmatpush1.msra.mxu0 %v426
        %1121 = vmatprep.subr.mxu0 0.0
        %1122 = vmatpush1.msra.mxu0 %v423
        %1123 = vmatprep.subr.mxu0 0.0
        %1124 = vmatpush2.msra.mxu0 0.0
        %1125 = vmatprep.subr.mxu0 0.0
        %1126 = vmatpush2.msra.mxu0 0.0
        %1127 = vmatprep.subr.mxu0 0.0
        %1128 = vmatpush2.msra.mxu0 0.0
        %1129 = vmatprep.subr.mxu0 0.0
        %1130 = vmatpush2.msra.mxu0 0.0
        %1131 = vmatprep.subr.mxu0 0.0
        %1132 = vmatpush2.msra.mxu0 0.0
        %1133 = vmatprep.subr.mxu0 0.0
        %1134 = vmatpush2.msra.mxu0 0.0
        %1135 = vmatprep.subr.mxu0 0.0
        %1136 = vmatpush2.msra.mxu0 0.0
        %1137 = vmatprep.subr.mxu0 0.0
        %1138 = vmatpush2.msra.mxu0 0.0
        %1139 = vmatprep.subr.mxu0 0.0
        %1140 = vmatpush2.msra.mxu0 0.0
        %1141 = vmatprep.subr.mxu0 0.0
        %1142 = vmatpush2.msra.mxu0 0.0
        %1143 = vmatprep.subr.mxu0 0.0
        %1144 = vmatpush2.msra.mxu0 0.0
        %1145 = vmatprep.subr.mxu0 0.0
        %1146 = vmatpush2.msra.mxu0 0.0
        %1147 = vmatprep.subr.mxu0 0.0
        %1148 = vmatpush2.msra.mxu0 0.0
        %1149 = vmatprep.subr.mxu0 0.0
        %1150 = vmatpush2.msra.mxu0 0.0
        %1151 = vmatprep.subr.mxu0 0.0
        %1152 = vmatpush2.msra.mxu0 0.0
        %1153 = vmatprep.subr.mxu0 0.0
        %1154 = vmatpush2.msra.mxu0 0.0
        %1155 = vmatprep.mubr.f32.mxu0 0.0
        %1156 = vmatmul.mubr.f32.gmra.mxu0 0.0
        %v1157 = vpop.f32.mrf.mxu0
        %v1158 = vadd.f32 0.0, %v1157
        %v1159 = vpop.f32.mrf.mxu0
        %1160 = vdwg.mxu0
        %v1161 = vadd.f32 %v1017, %v1087
        %v1162 = vadd.f32 %v1018, %v1089
        %v1163 = vxor.u32 %v1161, 2147483648
        %v1164 = vxor.u32 %v1162, 2147483648
        %v1165 = vmul.f32 %v1163, 1.442695
        %v1166 = vpow.pop %v1165
        %v1167 = vmul.f32 %v1164, 1.442695
        %v1168 = vpow.pop %v1167
        %v1169 = vadd.f32 %v1166, 1.0
        %v1170 = vadd.f32 %v1168, 1.0
        %v1171 = vrcp.pop %v1169
        %v1172 = vmul.f32 1.0, %v1171
        %v1173 = vrcp.pop %v1170
        %v1174 = vmul.f32 1.0, %v1173
        %v1175 = vadd.f32 %v1158, %v475
        %v1176 = vmul.f32 %v1172, %v1175
        %v1177 = vadd.f32 %v1019, %v1176
        %v1178 = vtanh.pop %v1177
        %v1179 = vsub.f32 0.0, %v1178
        %v1180 = vmul.f32 %v1174, %v1179
        %v1181 = vadd.f32 %v1178, %v1180
        %1182 = vst [vmem:[#allocation11] sm:$0xff] %v1181
        %s1183 = scalar_lea.vmem [#allocation2], 24
        %v1184 = vld [vmem:[%s1183] sm:$0xff]
        %v1185 = vld [vmem:[%s1183 + $0x8] sm:$0xff]
        %v1186 = vld [vmem:[%s1183 + $0x10] sm:$0xff]
        %1187 = vmatprep.subr.mxu0 %v467
        %1188 = vmatpush1.msra.mxu0 %v466
        %1189 = vmatprep.subr.mxu0 %v464
        %1190 = vmatpush1.msra.mxu0 %v463
        %1191 = vmatprep.subr.mxu0 %v461
        %1192 = vmatpush1.msra.mxu0 %v460
        %1193 = vmatprep.subr.mxu0 %v458
        %1194 = vmatpush1.msra.mxu0 %v457
        %1195 = vmatprep.subr.mxu0 %v455
        %1196 = vmatpush1.msra.mxu0 %v454
        %1197 = vmatprep.subr.mxu0 %v452
        %1198 = vmatpush1.msra.mxu0 %v451
        %1199 = vmatprep.subr.mxu0 %v449
        %1200 = vmatpush1.msra.mxu0 %v448
        %1201 = vmatprep.subr.mxu0 %v446
        %1202 = vmatpush1.msra.mxu0 %v445
        %1203 = vmatprep.subr.mxu0 %v443
        %1204 = vmatpush1.msra.mxu0 %v442
        %1205 = vmatprep.subr.mxu0 %v440
        %1206 = vmatpush1.msra.mxu0 %v439
        %1207 = vmatprep.subr.mxu0 %v437
        %1208 = vmatpush1.msra.mxu0 %v436
        %1209 = vmatprep.subr.mxu0 %v434
        %1210 = vmatpush1.msra.mxu0 %v433
        %1211 = vmatprep.subr.mxu0 %v431
        %1212 = vmatpush1.msra.mxu0 %v430
        %1213 = vmatprep.subr.mxu0 %v428
        %1214 = vmatpush1.msra.mxu0 %v427
        %1215 = vmatprep.subr.mxu0 %v425
        %1216 = vmatpush1.msra.mxu0 %v424
        %1217 = vmatprep.subr.mxu0 %v422
        %1218 = vmatpush1.msra.mxu0 %v421
        %1219 = vmatprep.subr.mxu0 0.0
        %1220 = vmatpush2.msra.mxu0 0.0
        %1221 = vmatprep.subr.mxu0 0.0
        %1222 = vmatpush2.msra.mxu0 0.0
        %1223 = vmatprep.subr.mxu0 0.0
        %1224 = vmatpush2.msra.mxu0 0.0
        %1225 = vmatprep.subr.mxu0 0.0
        %1226 = vmatpush2.msra.mxu0 0.0
        %1227 = vmatprep.subr.mxu0 0.0
        %1228 = vmatpush2.msra.mxu0 0.0
        %1229 = vmatprep.subr.mxu0 0.0
        %1230 = vmatpush2.msra.mxu0 0.0
        %1231 = vmatprep.subr.mxu0 0.0
        %1232 = vmatpush2.msra.mxu0 0.0
        %1233 = vmatprep.subr.mxu0 0.0
        %1234 = vmatpush2.msra.mxu0 0.0
        %1235 = vmatprep.subr.mxu0 0.0
        %1236 = vmatpush2.msra.mxu0 0.0
        %1237 = vmatprep.subr.mxu0 0.0
        %1238 = vmatpush2.msra.mxu0 0.0
        %1239 = vmatprep.subr.mxu0 0.0
        %1240 = vmatpush2.msra.mxu0 0.0
        %1241 = vmatprep.subr.mxu0 0.0
        %1242 = vmatpush2.msra.mxu0 0.0
        %1243 = vmatprep.subr.mxu0 0.0
        %1244 = vmatpush2.msra.mxu0 0.0
        %1245 = vmatprep.subr.mxu0 0.0
        %1246 = vmatpush2.msra.mxu0 0.0
        %1247 = vmatprep.subr.mxu0 0.0
        %1248 = vmatpush2.msra.mxu0 0.0
        %1249 = vmatprep.subr.mxu0 0.0
        %1250 = vmatpush2.msra.mxu0 0.0
        %1251 = vmatprep.mubr.f32.mxu0 0.0
        %1252 = vmatmul.mubr.f32.gmra.mxu0 %v1181
        %v1253 = vpop.f32.mrf.mxu0
        %v1254 = vadd.f32 0.0, %v1253
        %v1255 = vpop.f32.mrf.mxu0
        %v1256 = vadd.f32 0.0, %v1255
        %1257 = vdwg.mxu0
        %1258 = vmatprep.subr.mxu0 0.0
        %1259 = vmatpush1.msra.mxu0 %v468
        %1260 = vmatprep.subr.mxu0 0.0
        %1261 = vmatpush1.msra.mxu0 %v465
        %1262 = vmatprep.subr.mxu0 0.0
        %1263 = vmatpush1.msra.mxu0 %v462
        %1264 = vmatprep.subr.mxu0 0.0
        %1265 = vmatpush1.msra.mxu0 %v459
        %1266 = vmatprep.subr.mxu0 0.0
        %1267 = vmatpush1.msra.mxu0 %v456
        %1268 = vmatprep.subr.mxu0 0.0
        %1269 = vmatpush1.msra.mxu0 %v453
        %1270 = vmatprep.subr.mxu0 0.0
        %1271 = vmatpush1.msra.mxu0 %v450
        %1272 = vmatprep.subr.mxu0 0.0
        %1273 = vmatpush1.msra.mxu0 %v447
        %1274 = vmatprep.subr.mxu0 0.0
        %1275 = vmatpush1.msra.mxu0 %v444
        %1276 = vmatprep.subr.mxu0 0.0
        %1277 = vmatpush1.msra.mxu0 %v441
        %1278 = vmatprep.subr.mxu0 0.0
        %1279 = vmatpush1.msra.mxu0 %v438
        %1280 = vmatprep.subr.mxu0 0.0
        %1281 = vmatpush1.msra.mxu0 %v435
        %1282 = vmatprep.subr.mxu0 0.0
        %1283 = vmatpush1.msra.mxu0 %v432
        %1284 = vmatprep.subr.mxu0 0.0
        %1285 = vmatpush1.msra.mxu0 %v429
        %1286 = vmatprep.subr.mxu0 0.0
        %1287 = vmatpush1.msra.mxu0 %v426
        %1288 = vmatprep.subr.mxu0 0.0
        %1289 = vmatpush1.msra.mxu0 %v423
        %1290 = vmatprep.subr.mxu0 0.0
        %1291 = vmatpush2.msra.mxu0 0.0
        %1292 = vmatprep.subr.mxu0 0.0
        %1293 = vmatpush2.msra.mxu0 0.0
        %1294 = vmatprep.subr.mxu0 0.0
        %1295 = vmatpush2.msra.mxu0 0.0
        %1296 = vmatprep.subr.mxu0 0.0
        %1297 = vmatpush2.msra.mxu0 0.0
        %1298 = vmatprep.subr.mxu0 0.0
        %1299 = vmatpush2.msra.mxu0 0.0
        %1300 = vmatprep.subr.mxu0 0.0
        %1301 = vmatpush2.msra.mxu0 0.0
        %1302 = vmatprep.subr.mxu0 0.0
        %1303 = vmatpush2.msra.mxu0 0.0
        %1304 = vmatprep.subr.mxu0 0.0
        %1305 = vmatpush2.msra.mxu0 0.0
        %1306 = vmatprep.subr.mxu0 0.0
        %1307 = vmatpush2.msra.mxu0 0.0
        %1308 = vmatprep.subr.mxu0 0.0
        %1309 = vmatpush2.msra.mxu0 0.0
        %1310 = vmatprep.subr.mxu0 0.0
        %1311 = vmatpush2.msra.mxu0 0.0
        %1312 = vmatprep.subr.mxu0 0.0
        %1313 = vmatpush2.msra.mxu0 0.0
        %1314 = vmatprep.subr.mxu0 0.0
        %1315 = vmatpush2.msra.mxu0 0.0
        %1316 = vmatprep.subr.mxu0 0.0
        %1317 = vmatpush2.msra.mxu0 0.0
        %1318 = vmatprep.subr.mxu0 0.0
        %1319 = vmatpush2.msra.mxu0 0.0
        %1320 = vmatprep.subr.mxu0 0.0
        %1321 = vmatpush2.msra.mxu0 0.0
        %1322 = vmatprep.mubr.f32.mxu0 0.0
        %1323 = vmatmul.mubr.f32.gmra.mxu0 %v1181
        %v1324 = vpop.f32.mrf.mxu0
        %v1325 = vadd.f32 0.0, %v1324
        %v1326 = vpop.f32.mrf.mxu0
        %1327 = vdwg.mxu0
        %v1328 = vadd.f32 %v1184, %v1254
        %v1329 = vadd.f32 %v1185, %v1256
        %v1330 = vxor.u32 %v1328, 2147483648
        %v1331 = vxor.u32 %v1329, 2147483648
        %v1332 = vmul.f32 %v1330, 1.442695
        %v1333 = vpow.pop %v1332
        %v1334 = vmul.f32 %v1331, 1.442695
        %v1335 = vpow.pop %v1334
        %v1336 = vadd.f32 %v1333, 1.0
        %v1337 = vadd.f32 %v1335, 1.0
        %v1338 = vrcp.pop %v1336
        %v1339 = vmul.f32 1.0, %v1338
        %v1340 = vrcp.pop %v1337
        %v1341 = vmul.f32 1.0, %v1340
        %v1342 = vadd.f32 %v1325, %v475
        %v1343 = vmul.f32 %v1339, %v1342
        %v1344 = vadd.f32 %v1186, %v1343
        %v1345 = vtanh.pop %v1344
        %v1346 = vsub.f32 %v1181, %v1345
        %v1347 = vmul.f32 %v1341, %v1346
        %v1348 = vadd.f32 %v1345, %v1347
        %s1349 = scalar_lea.vmem [#allocation11], 8
        %1350 = vst [vmem:[%s1349] sm:$0xff] %v1348
        %s1351 = scalar_lea.vmem [#allocation2], 48
        %v1352 = vld [vmem:[%s1351] sm:$0xff]
        %v1353 = vld [vmem:[%s1351 + $0x8] sm:$0xff]
        %v1354 = vld [vmem:[%s1351 + $0x10] sm:$0xff]
        %1355 = vmatprep.subr.mxu0 %v467
        %1356 = vmatpush1.msra.mxu0 %v466
        %1357 = vmatprep.subr.mxu0 %v464
        %1358 = vmatpush1.msra.mxu0 %v463
        %1359 = vmatprep.subr.mxu0 %v461
        %1360 = vmatpush1.msra.mxu0 %v460
        %1361 = vmatprep.subr.mxu0 %v458
        %1362 = vmatpush1.msra.mxu0 %v457
        %1363 = vmatprep.subr.mxu0 %v455
        %1364 = vmatpush1.msra.mxu0 %v454
        %1365 = vmatprep.subr.mxu0 %v452
        %1366 = vmatpush1.msra.mxu0 %v451
        %1367 = vmatprep.subr.mxu0 %v449
        %1368 = vmatpush1.msra.mxu0 %v448
        %1369 = vmatprep.subr.mxu0 %v446
        %1370 = vmatpush1.msra.mxu0 %v445
        %1371 = vmatprep.subr.mxu0 %v443
        %1372 = vmatpush1.msra.mxu0 %v442
        %1373 = vmatprep.subr.mxu0 %v440
        %1374 = vmatpush1.msra.mxu0 %v439
        %1375 = vmatprep.subr.mxu0 %v437
        %1376 = vmatpush1.msra.mxu0 %v436
        %1377 = vmatprep.subr.mxu0 %v434
        %1378 = vmatpush1.msra.mxu0 %v433
        %1379 = vmatprep.subr.mxu0 %v431
        %1380 = vmatpush1.msra.mxu0 %v430
        %1381 = vmatprep.subr.mxu0 %v428
        %1382 = vmatpush1.msra.mxu0 %v427
        %1383 = vmatprep.subr.mxu0 %v425
        %1384 = vmatpush1.msra.mxu0 %v424
        %1385 = vmatprep.subr.mxu0 %v422
        %1386 = vmatpush1.msra.mxu0 %v421
        %1387 = vmatprep.subr.mxu0 0.0
        %1388 = vmatpush2.msra.mxu0 0.0
        %1389 = vmatprep.subr.mxu0 0.0
        %1390 = vmatpush2.msra.mxu0 0.0
        %1391 = vmatprep.subr.mxu0 0.0
        %1392 = vmatpush2.msra.mxu0 0.0
        %1393 = vmatprep.subr.mxu0 0.0
        %1394 = vmatpush2.msra.mxu0 0.0
        %1395 = vmatprep.subr.mxu0 0.0
        %1396 = vmatpush2.msra.mxu0 0.0
        %1397 = vmatprep.subr.mxu0 0.0
        %1398 = vmatpush2.msra.mxu0 0.0
        %1399 = vmatprep.subr.mxu0 0.0
        %1400 = vmatpush2.msra.mxu0 0.0
        %1401 = vmatprep.subr.mxu0 0.0
        %1402 = vmatpush2.msra.mxu0 0.0
        %1403 = vmatprep.subr.mxu0 0.0
        %1404 = vmatpush2.msra.mxu0 0.0
        %1405 = vmatprep.subr.mxu0 0.0
        %1406 = vmatpush2.msra.mxu0 0.0
        %1407 = vmatprep.subr.mxu0 0.0
        %1408 = vmatpush2.msra.mxu0 0.0
        %1409 = vmatprep.subr.mxu0 0.0
        %1410 = vmatpush2.msra.mxu0 0.0
        %1411 = vmatprep.subr.mxu0 0.0
        %1412 = vmatpush2.msra.mxu0 0.0
        %1413 = vmatprep.subr.mxu0 0.0
        %1414 = vmatpush2.msra.mxu0 0.0
        %1415 = vmatprep.subr.mxu0 0.0
        %1416 = vmatpush2.msra.mxu0 0.0
        %1417 = vmatprep.subr.mxu0 0.0
        %1418 = vmatpush2.msra.mxu0 0.0
        %1419 = vmatprep.mubr.f32.mxu0 0.0
        %1420 = vmatmul.mubr.f32.gmra.mxu0 %v1348
        %v1421 = vpop.f32.mrf.mxu0
        %v1422 = vadd.f32 0.0, %v1421
        %v1423 = vpop.f32.mrf.mxu0
        %v1424 = vadd.f32 0.0, %v1423
        %1425 = vdwg.mxu0
        %1426 = vmatprep.subr.mxu0 0.0
        %1427 = vmatpush1.msra.mxu0 %v468
        %1428 = vmatprep.subr.mxu0 0.0
        %1429 = vmatpush1.msra.mxu0 %v465
        %1430 = vmatprep.subr.mxu0 0.0
        %1431 = vmatpush1.msra.mxu0 %v462
        %1432 = vmatprep.subr.mxu0 0.0
        %1433 = vmatpush1.msra.mxu0 %v459
        %1434 = vmatprep.subr.mxu0 0.0
        %1435 = vmatpush1.msra.mxu0 %v456
        %1436 = vmatprep.subr.mxu0 0.0
        %1437 = vmatpush1.msra.mxu0 %v453
        %1438 = vmatprep.subr.mxu0 0.0
        %1439 = vmatpush1.msra.mxu0 %v450
        %1440 = vmatprep.subr.mxu0 0.0
        %1441 = vmatpush1.msra.mxu0 %v447
        %1442 = vmatprep.subr.mxu0 0.0
        %1443 = vmatpush1.msra.mxu0 %v444
        %1444 = vmatprep.subr.mxu0 0.0
        %1445 = vmatpush1.msra.mxu0 %v441
        %1446 = vmatprep.subr.mxu0 0.0
        %1447 = vmatpush1.msra.mxu0 %v438
        %1448 = vmatprep.subr.mxu0 0.0
        %1449 = vmatpush1.msra.mxu0 %v435
        %1450 = vmatprep.subr.mxu0 0.0
        %1451 = vmatpush1.msra.mxu0 %v432
        %1452 = vmatprep.subr.mxu0 0.0
        %1453 = vmatpush1.msra.mxu0 %v429
        %1454 = vmatprep.subr.mxu0 0.0
        %1455 = vmatpush1.msra.mxu0 %v426
        %1456 = vmatprep.subr.mxu0 0.0
        %1457 = vmatpush1.msra.mxu0 %v423
        %1458 = vmatprep.subr.mxu0 0.0
        %1459 = vmatpush2.msra.mxu0 0.0
        %1460 = vmatprep.subr.mxu0 0.0
        %1461 = vmatpush2.msra.mxu0 0.0
        %1462 = vmatprep.subr.mxu0 0.0
        %1463 = vmatpush2.msra.mxu0 0.0
        %1464 = vmatprep.subr.mxu0 0.0
        %1465 = vmatpush2.msra.mxu0 0.0
        %1466 = vmatprep.subr.mxu0 0.0
        %1467 = vmatpush2.msra.mxu0 0.0
        %1468 = vmatprep.subr.mxu0 0.0
        %1469 = vmatpush2.msra.mxu0 0.0
        %1470 = vmatprep.subr.mxu0 0.0
        %1471 = vmatpush2.msra.mxu0 0.0
        %1472 = vmatprep.subr.mxu0 0.0
        %1473 = vmatpush2.msra.mxu0 0.0
        %1474 = vmatprep.subr.mxu0 0.0
        %1475 = vmatpush2.msra.mxu0 0.0
        %1476 = vmatprep.subr.mxu0 0.0
        %1477 = vmatpush2.msra.mxu0 0.0
        %1478 = vmatprep.subr.mxu0 0.0
        %1479 = vmatpush2.msra.mxu0 0.0
        %1480 = vmatprep.subr.mxu0 0.0
        %1481 = vmatpush2.msra.mxu0 0.0
        %1482 = vmatprep.subr.mxu0 0.0
        %1483 = vmatpush2.msra.mxu0 0.0
        %1484 = vmatprep.subr.mxu0 0.0
        %1485 = vmatpush2.msra.mxu0 0.0
        %1486 = vmatprep.subr.mxu0 0.0
        %1487 = vmatpush2.msra.mxu0 0.0
        %1488 = vmatprep.subr.mxu0 0.0
        %1489 = vmatpush2.msra.mxu0 0.0
        %1490 = vmatprep.mubr.f32.mxu0 0.0
        %1491 = vmatmul.mubr.f32.gmra.mxu0 %v1348
        %v1492 = vpop.f32.mrf.mxu0
        %v1493 = vadd.f32 0.0, %v1492
        %v1494 = vpop.f32.mrf.mxu0
        %1495 = vdwg.mxu0
        %v1496 = vadd.f32 %v1352, %v1422
        %v1497 = vadd.f32 %v1353, %v1424
        %v1498 = vxor.u32 %v1496, 2147483648
        %v1499 = vxor.u32 %v1497, 2147483648
        %v1500 = vmul.f32 %v1498, 1.442695
        %v1501 = vpow.pop %v1500
        %v1502 = vmul.f32 %v1499, 1.442695
        %v1503 = vpow.pop %v1502
        %v1504 = vadd.f32 %v1501, 1.0
        %v1505 = vadd.f32 %v1503, 1.0
        %v1506 = vrcp.pop %v1504
        %v1507 = vmul.f32 1.0, %v1506
        %v1508 = vrcp.pop %v1505
        %v1509 = vmul.f32 1.0, %v1508
        %v1510 = vadd.f32 %v1493, %v475
        %v1511 = vmul.f32 %v1507, %v1510
        %v1512 = vadd.f32 %v1354, %v1511
        %v1513 = vtanh.pop %v1512
        %v1514 = vsub.f32 %v1348, %v1513
        %v1515 = vmul.f32 %v1509, %v1514
        %v1516 = vadd.f32 %v1513, %v1515
        %s1517 = scalar_lea.vmem [#allocation11], 16
        %1518 = vst [vmem:[%s1517] sm:$0xff] %v1516
        %s1519 = scalar_lea.vmem [#allocation2], 72
        %v1520 = vld [vmem:[%s1519] sm:$0xff]
        %v1521 = vld [vmem:[%s1519 + $0x8] sm:$0xff]
        %v1522 = vld [vmem:[%s1519 + $0x10] sm:$0xff]
        %1523 = vmatprep.subr.mxu0 %v467
        %1524 = vmatpush1.msra.mxu0 %v466
        %1525 = vmatprep.subr.mxu0 %v464
        %1526 = vmatpush1.msra.mxu0 %v463
        %1527 = vmatprep.subr.mxu0 %v461
        %1528 = vmatpush1.msra.mxu0 %v460
        %1529 = vmatprep.subr.mxu0 %v458
        %1530 = vmatpush1.msra.mxu0 %v457
        %1531 = vmatprep.subr.mxu0 %v455
        %1532 = vmatpush1.msra.mxu0 %v454
        %1533 = vmatprep.subr.mxu0 %v452
        %1534 = vmatpush1.msra.mxu0 %v451
        %1535 = vmatprep.subr.mxu0 %v449
        %1536 = vmatpush1.msra.mxu0 %v448
        %1537 = vmatprep.subr.mxu0 %v446
        %1538 = vmatpush1.msra.mxu0 %v445
        %1539 = vmatprep.subr.mxu0 %v443
        %1540 = vmatpush1.msra.mxu0 %v442
        %1541 = vmatprep.subr.mxu0 %v440
        %1542 = vmatpush1.msra.mxu0 %v439
        %1543 = vmatprep.subr.mxu0 %v437
        %1544 = vmatpush1.msra.mxu0 %v436
        %1545 = vmatprep.subr.mxu0 %v434
        %1546 = vmatpush1.msra.mxu0 %v433
        %1547 = vmatprep.subr.mxu0 %v431
        %1548 = vmatpush1.msra.mxu0 %v430
        %1549 = vmatprep.subr.mxu0 %v428
        %1550 = vmatpush1.msra.mxu0 %v427
        %1551 = vmatprep.subr.mxu0 %v425
        %1552 = vmatpush1.msra.mxu0 %v424
        %1553 = vmatprep.subr.mxu0 %v422
        %1554 = vmatpush1.msra.mxu0 %v421
        %1555 = vmatprep.subr.mxu0 0.0
        %1556 = vmatpush2.msra.mxu0 0.0
        %1557 = vmatprep.subr.mxu0 0.0
        %1558 = vmatpush2.msra.mxu0 0.0
        %1559 = vmatprep.subr.mxu0 0.0
        %1560 = vmatpush2.msra.mxu0 0.0
        %1561 = vmatprep.subr.mxu0 0.0
        %1562 = vmatpush2.msra.mxu0 0.0
        %1563 = vmatprep.subr.mxu0 0.0
        %1564 = vmatpush2.msra.mxu0 0.0
        %1565 = vmatprep.subr.mxu0 0.0
        %1566 = vmatpush2.msra.mxu0 0.0
        %1567 = vmatprep.subr.mxu0 0.0
        %1568 = vmatpush2.msra.mxu0 0.0
        %1569 = vmatprep.subr.mxu0 0.0
        %1570 = vmatpush2.msra.mxu0 0.0
        %1571 = vmatprep.subr.mxu0 0.0
        %1572 = vmatpush2.msra.mxu0 0.0
        %1573 = vmatprep.subr.mxu0 0.0
        %1574 = vmatpush2.msra.mxu0 0.0
        %1575 = vmatprep.subr.mxu0 0.0
        %1576 = vmatpush2.msra.mxu0 0.0
        %1577 = vmatprep.subr.mxu0 0.0
        %1578 = vmatpush2.msra.mxu0 0.0
        %1579 = vmatprep.subr.mxu0 0.0
        %1580 = vmatpush2.msra.mxu0 0.0
        %1581 = vmatprep.subr.mxu0 0.0
        %1582 = vmatpush2.msra.mxu0 0.0
        %1583 = vmatprep.subr.mxu0 0.0
        %1584 = vmatpush2.msra.mxu0 0.0
        %1585 = vmatprep.subr.mxu0 0.0
        %1586 = vmatpush2.msra.mxu0 0.0
        %1587 = vmatprep.mubr.f32.mxu0 0.0
        %1588 = vmatmul.mubr.f32.gmra.mxu0 %v1516
        %v1589 = vpop.f32.mrf.mxu0
        %v1590 = vadd.f32 0.0, %v1589
        %v1591 = vpop.f32.mrf.mxu0
        %v1592 = vadd.f32 0.0, %v1591
        %1593 = vdwg.mxu0
        %1594 = vmatprep.subr.mxu0 0.0
        %1595 = vmatpush1.msra.mxu0 %v468
        %1596 = vmatprep.subr.mxu0 0.0
        %1597 = vmatpush1.msra.mxu0 %v465
        %1598 = vmatprep.subr.mxu0 0.0
        %1599 = vmatpush1.msra.mxu0 %v462
        %1600 = vmatprep.subr.mxu0 0.0
        %1601 = vmatpush1.msra.mxu0 %v459
        %1602 = vmatprep.subr.mxu0 0.0
        %1603 = vmatpush1.msra.mxu0 %v456
        %1604 = vmatprep.subr.mxu0 0.0
        %1605 = vmatpush1.msra.mxu0 %v453
        %1606 = vmatprep.subr.mxu0 0.0
        %1607 = vmatpush1.msra.mxu0 %v450
        %1608 = vmatprep.subr.mxu0 0.0
        %1609 = vmatpush1.msra.mxu0 %v447
        %1610 = vmatprep.subr.mxu0 0.0
        %1611 = vmatpush1.msra.mxu0 %v444
        %1612 = vmatprep.subr.mxu0 0.0
        %1613 = vmatpush1.msra.mxu0 %v441
        %1614 = vmatprep.subr.mxu0 0.0
        %1615 = vmatpush1.msra.mxu0 %v438
        %1616 = vmatprep.subr.mxu0 0.0
        %1617 = vmatpush1.msra.mxu0 %v435
        %1618 = vmatprep.subr.mxu0 0.0
        %1619 = vmatpush1.msra.mxu0 %v432
        %1620 = vmatprep.subr.mxu0 0.0
        %1621 = vmatpush1.msra.mxu0 %v429
        %1622 = vmatprep.subr.mxu0 0.0
        %1623 = vmatpush1.msra.mxu0 %v426
        %1624 = vmatprep.subr.mxu0 0.0
        %1625 = vmatpush1.msra.mxu0 %v423
        %1626 = vmatprep.subr.mxu0 0.0
        %1627 = vmatpush2.msra.mxu0 0.0
        %1628 = vmatprep.subr.mxu0 0.0
        %1629 = vmatpush2.msra.mxu0 0.0
        %1630 = vmatprep.subr.mxu0 0.0
        %1631 = vmatpush2.msra.mxu0 0.0
        %1632 = vmatprep.subr.mxu0 0.0
        %1633 = vmatpush2.msra.mxu0 0.0
        %1634 = vmatprep.subr.mxu0 0.0
        %1635 = vmatpush2.msra.mxu0 0.0
        %1636 = vmatprep.subr.mxu0 0.0
        %1637 = vmatpush2.msra.mxu0 0.0
        %1638 = vmatprep.subr.mxu0 0.0
        %1639 = vmatpush2.msra.mxu0 0.0
        %1640 = vmatprep.subr.mxu0 0.0
        %1641 = vmatpush2.msra.mxu0 0.0
        %1642 = vmatprep.subr.mxu0 0.0
        %1643 = vmatpush2.msra.mxu0 0.0
        %1644 = vmatprep.subr.mxu0 0.0
        %1645 = vmatpush2.msra.mxu0 0.0
        %1646 = vmatprep.subr.mxu0 0.0
        %1647 = vmatpush2.msra.mxu0 0.0
        %1648 = vmatprep.subr.mxu0 0.0
        %1649 = vmatpush2.msra.mxu0 0.0
        %1650 = vmatprep.subr.mxu0 0.0
        %1651 = vmatpush2.msra.mxu0 0.0
        %1652 = vmatprep.subr.mxu0 0.0
        %1653 = vmatpush2.msra.mxu0 0.0
        %1654 = vmatprep.subr.mxu0 0.0
        %1655 = vmatpush2.msra.mxu0 0.0
        %1656 = vmatprep.subr.mxu0 0.0
        %1657 = vmatpush2.msra.mxu0 0.0
        %1658 = vmatprep.mubr.f32.mxu0 0.0
        %1659 = vmatmul.mubr.f32.gmra.mxu0 %v1516
        %v1660 = vpop.f32.mrf.mxu0
        %v1661 = vadd.f32 0.0, %v1660
        %v1662 = vpop.f32.mrf.mxu0
        %1663 = vdwg.mxu0
        %v1664 = vadd.f32 %v1520, %v1590
        %v1665 = vadd.f32 %v1521, %v1592
        %v1666 = vxor.u32 %v1664, 2147483648
        %v1667 = vxor.u32 %v1665, 2147483648
        %v1668 = vmul.f32 %v1666, 1.442695
        %v1669 = vpow.pop %v1668
        %v1670 = vmul.f32 %v1667, 1.442695
        %v1671 = vpow.pop %v1670
        %v1672 = vadd.f32 %v1669, 1.0
        %v1673 = vadd.f32 %v1671, 1.0
        %v1674 = vrcp.pop %v1672
        %v1675 = vmul.f32 1.0, %v1674
        %v1676 = vrcp.pop %v1673
        %v1677 = vmul.f32 1.0, %v1676
        %v1678 = vadd.f32 %v1661, %v475
        %v1679 = vmul.f32 %v1675, %v1678
        %v1680 = vadd.f32 %v1522, %v1679
        %v1681 = vtanh.pop %v1680
        %v1682 = vsub.f32 %v1516, %v1681
        %v1683 = vmul.f32 %v1677, %v1682
        %v1684 = vadd.f32 %v1681, %v1683
        %s1685 = scalar_lea.vmem [#allocation11], 24
        %1686 = vst [vmem:[%s1685] sm:$0xff] %v1684
        %s1687 = scalar_lea.vmem [#allocation2], 96
        %v1688 = vld [vmem:[%s1687] sm:$0xff]
        %v1689 = vld [vmem:[%s1687 + $0x8] sm:$0xff]
        %v1690 = vld [vmem:[%s1687 + $0x10] sm:$0xff]
        %1691 = vmatprep.subr.mxu0 %v467
        %1692 = vmatpush1.msra.mxu0 %v466
        %1693 = vmatprep.subr.mxu0 %v464
        %1694 = vmatpush1.msra.mxu0 %v463
        %1695 = vmatprep.subr.mxu0 %v461
        %1696 = vmatpush1.msra.mxu0 %v460
        %1697 = vmatprep.subr.mxu0 %v458
        %1698 = vmatpush1.msra.mxu0 %v457
        %1699 = vmatprep.subr.mxu0 %v455
        %1700 = vmatpush1.msra.mxu0 %v454
        %1701 = vmatprep.subr.mxu0 %v452
        %1702 = vmatpush1.msra.mxu0 %v451
        %1703 = vmatprep.subr.mxu0 %v449
        %1704 = vmatpush1.msra.mxu0 %v448
        %1705 = vmatprep.subr.mxu0 %v446
        %1706 = vmatpush1.msra.mxu0 %v445
        %1707 = vmatprep.subr.mxu0 %v443
        %1708 = vmatpush1.msra.mxu0 %v442
        %1709 = vmatprep.subr.mxu0 %v440
        %1710 = vmatpush1.msra.mxu0 %v439
        %1711 = vmatprep.subr.mxu0 %v437
        %1712 = vmatpush1.msra.mxu0 %v436
        %1713 = vmatprep.subr.mxu0 %v434
        %1714 = vmatpush1.msra.mxu0 %v433
        %1715 = vmatprep.subr.mxu0 %v431
        %1716 = vmatpush1.msra.mxu0 %v430
        %1717 = vmatprep.subr.mxu0 %v428
        %1718 = vmatpush1.msra.mxu0 %v427
        %1719 = vmatprep.subr.mxu0 %v425
        %1720 = vmatpush1.msra.mxu0 %v424
        %1721 = vmatprep.subr.mxu0 %v422
        %1722 = vmatpush1.msra.mxu0 %v421
        %1723 = vmatprep.subr.mxu0 0.0
        %1724 = vmatpush2.msra.mxu0 0.0
        %1725 = vmatprep.subr.mxu0 0.0
        %1726 = vmatpush2.msra.mxu0 0.0
        %1727 = vmatprep.subr.mxu0 0.0
        %1728 = vmatpush2.msra.mxu0 0.0
        %1729 = vmatprep.subr.mxu0 0.0
        %1730 = vmatpush2.msra.mxu0 0.0
        %1731 = vmatprep.subr.mxu0 0.0
        %1732 = vmatpush2.msra.mxu0 0.0
        %1733 = vmatprep.subr.mxu0 0.0
        %1734 = vmatpush2.msra.mxu0 0.0
        %1735 = vmatprep.subr.mxu0 0.0
        %1736 = vmatpush2.msra.mxu0 0.0
        %1737 = vmatprep.subr.mxu0 0.0
        %1738 = vmatpush2.msra.mxu0 0.0
        %1739 = vmatprep.subr.mxu0 0.0
        %1740 = vmatpush2.msra.mxu0 0.0
        %1741 = vmatprep.subr.mxu0 0.0
        %1742 = vmatpush2.msra.mxu0 0.0
        %1743 = vmatprep.subr.mxu0 0.0
        %1744 = vmatpush2.msra.mxu0 0.0
        %1745 = vmatprep.subr.mxu0 0.0
        %1746 = vmatpush2.msra.mxu0 0.0
        %1747 = vmatprep.subr.mxu0 0.0
        %1748 = vmatpush2.msra.mxu0 0.0
        %1749 = vmatprep.subr.mxu0 0.0
        %1750 = vmatpush2.msra.mxu0 0.0
        %1751 = vmatprep.subr.mxu0 0.0
        %1752 = vmatpush2.msra.mxu0 0.0
        %1753 = vmatprep.subr.mxu0 0.0
        %1754 = vmatpush2.msra.mxu0 0.0
        %1755 = vmatprep.mubr.f32.mxu0 0.0
        %1756 = vmatmul.mubr.f32.gmra.mxu0 %v1684
        %v1757 = vpop.f32.mrf.mxu0
        %v1758 = vadd.f32 0.0, %v1757
        %v1759 = vpop.f32.mrf.mxu0
        %v1760 = vadd.f32 0.0, %v1759
        %1761 = vdwg.mxu0
        %1762 = vmatprep.subr.mxu0 0.0
        %1763 = vmatpush1.msra.mxu0 %v468
        %1764 = vmatprep.subr.mxu0 0.0
        %1765 = vmatpush1.msra.mxu0 %v465
        %1766 = vmatprep.subr.mxu0 0.0
        %1767 = vmatpush1.msra.mxu0 %v462
        %1768 = vmatprep.subr.mxu0 0.0
        %1769 = vmatpush1.msra.mxu0 %v459
        %1770 = vmatprep.subr.mxu0 0.0
        %1771 = vmatpush1.msra.mxu0 %v456
        %1772 = vmatprep.subr.mxu0 0.0
        %1773 = vmatpush1.msra.mxu0 %v453
        %1774 = vmatprep.subr.mxu0 0.0
        %1775 = vmatpush1.msra.mxu0 %v450
        %1776 = vmatprep.subr.mxu0 0.0
        %1777 = vmatpush1.msra.mxu0 %v447
        %1778 = vmatprep.subr.mxu0 0.0
        %1779 = vmatpush1.msra.mxu0 %v444
        %1780 = vmatprep.subr.mxu0 0.0
        %1781 = vmatpush1.msra.mxu0 %v441
        %1782 = vmatprep.subr.mxu0 0.0
        %1783 = vmatpush1.msra.mxu0 %v438
        %1784 = vmatprep.subr.mxu0 0.0
        %1785 = vmatpush1.msra.mxu0 %v435
        %1786 = vmatprep.subr.mxu0 0.0
        %1787 = vmatpush1.msra.mxu0 %v432
        %1788 = vmatprep.subr.mxu0 0.0
        %1789 = vmatpush1.msra.mxu0 %v429
        %1790 = vmatprep.subr.mxu0 0.0
        %1791 = vmatpush1.msra.mxu0 %v426
        %1792 = vmatprep.subr.mxu0 0.0
        %1793 = vmatpush1.msra.mxu0 %v423
        %1794 = vmatprep.subr.mxu0 0.0
        %1795 = vmatpush2.msra.mxu0 0.0
        %1796 = vmatprep.subr.mxu0 0.0
        %1797 = vmatpush2.msra.mxu0 0.0
        %1798 = vmatprep.subr.mxu0 0.0
        %1799 = vmatpush2.msra.mxu0 0.0
        %1800 = vmatprep.subr.mxu0 0.0
        %1801 = vmatpush2.msra.mxu0 0.0
        %1802 = vmatprep.subr.mxu0 0.0
        %1803 = vmatpush2.msra.mxu0 0.0
        %1804 = vmatprep.subr.mxu0 0.0
        %1805 = vmatpush2.msra.mxu0 0.0
        %1806 = vmatprep.subr.mxu0 0.0
        %1807 = vmatpush2.msra.mxu0 0.0
        %1808 = vmatprep.subr.mxu0 0.0
        %1809 = vmatpush2.msra.mxu0 0.0
        %1810 = vmatprep.subr.mxu0 0.0
        %1811 = vmatpush2.msra.mxu0 0.0
        %1812 = vmatprep.subr.mxu0 0.0
        %1813 = vmatpush2.msra.mxu0 0.0
        %1814 = vmatprep.subr.mxu0 0.0
        %1815 = vmatpush2.msra.mxu0 0.0
        %1816 = vmatprep.subr.mxu0 0.0
        %1817 = vmatpush2.msra.mxu0 0.0
        %1818 = vmatprep.subr.mxu0 0.0
        %1819 = vmatpush2.msra.mxu0 0.0
        %1820 = vmatprep.subr.mxu0 0.0
        %1821 = vmatpush2.msra.mxu0 0.0
        %1822 = vmatprep.subr.mxu0 0.0
        %1823 = vmatpush2.msra.mxu0 0.0
        %1824 = vmatprep.subr.mxu0 0.0
        %1825 = vmatpush2.msra.mxu0 0.0
        %1826 = vmatprep.mubr.f32.mxu0 0.0
        %1827 = vmatmul.mubr.f32.gmra.mxu0 %v1684
        %v1828 = vpop.f32.mrf.mxu0
        %v1829 = vadd.f32 0.0, %v1828
        %v1830 = vpop.f32.mrf.mxu0
        %1831 = vdwg.mxu0
        %v1832 = vadd.f32 %v1688, %v1758
        %v1833 = vadd.f32 %v1689, %v1760
        %v1834 = vxor.u32 %v1832, 2147483648
        %v1835 = vxor.u32 %v1833, 2147483648
        %v1836 = vmul.f32 %v1834, 1.442695
        %v1837 = vpow.pop %v1836
        %v1838 = vmul.f32 %v1835, 1.442695
        %v1839 = vpow.pop %v1838
        %v1840 = vadd.f32 %v1837, 1.0
        %v1841 = vadd.f32 %v1839, 1.0
        %v1842 = vrcp.pop %v1840
        %v1843 = vmul.f32 1.0, %v1842
        %v1844 = vrcp.pop %v1841
        %v1845 = vmul.f32 1.0, %v1844
        %v1846 = vadd.f32 %v1829, %v475
        %v1847 = vmul.f32 %v1843, %v1846
        %v1848 = vadd.f32 %v1690, %v1847
        %v1849 = vtanh.pop %v1848
        %v1850 = vsub.f32 %v1684, %v1849
        %v1851 = vmul.f32 %v1845, %v1850
        %v1852 = vadd.f32 %v1849, %v1851
        %s1853 = scalar_lea.vmem [#allocation11], 32
        %1854 = vst [vmem:[%s1853] sm:$0xff] %v1852
        %s1855 = scalar_lea.vmem [#allocation2], 120
        %v1856 = vld [vmem:[%s1855] sm:$0xff]
        %v1857 = vld [vmem:[%s1855 + $0x8] sm:$0xff]
        %v1858 = vld [vmem:[%s1855 + $0x10] sm:$0xff]
        %1859 = vmatprep.subr.mxu0 %v467
        %1860 = vmatpush1.msra.mxu0 %v466
        %1861 = vmatprep.subr.mxu0 %v464
        %1862 = vmatpush1.msra.mxu0 %v463
        %1863 = vmatprep.subr.mxu0 %v461
        %1864 = vmatpush1.msra.mxu0 %v460
        %1865 = vmatprep.subr.mxu0 %v458
        %1866 = vmatpush1.msra.mxu0 %v457
        %1867 = vmatprep.subr.mxu0 %v455
        %1868 = vmatpush1.msra.mxu0 %v454
        %1869 = vmatprep.subr.mxu0 %v452
        %1870 = vmatpush1.msra.mxu0 %v451
        %1871 = vmatprep.subr.mxu0 %v449
        %1872 = vmatpush1.msra.mxu0 %v448
        %1873 = vmatprep.subr.mxu0 %v446
        %1874 = vmatpush1.msra.mxu0 %v445
        %1875 = vmatprep.subr.mxu0 %v443
        %1876 = vmatpush1.msra.mxu0 %v442
        %1877 = vmatprep.subr.mxu0 %v440
        %1878 = vmatpush1.msra.mxu0 %v439
        %1879 = vmatprep.subr.mxu0 %v437
        %1880 = vmatpush1.msra.mxu0 %v436
        %1881 = vmatprep.subr.mxu0 %v434
        %1882 = vmatpush1.msra.mxu0 %v433
        %1883 = vmatprep.subr.mxu0 %v431
        %1884 = vmatpush1.msra.mxu0 %v430
        %1885 = vmatprep.subr.mxu0 %v428
        %1886 = vmatpush1.msra.mxu0 %v427
        %1887 = vmatprep.subr.mxu0 %v425
        %1888 = vmatpush1.msra.mxu0 %v424
        %1889 = vmatprep.subr.mxu0 %v422
        %1890 = vmatpush1.msra.mxu0 %v421
        %1891 = vmatprep.subr.mxu0 0.0
        %1892 = vmatpush2.msra.mxu0 0.0
        %1893 = vmatprep.subr.mxu0 0.0
        %1894 = vmatpush2.msra.mxu0 0.0
        %1895 = vmatprep.subr.mxu0 0.0
        %1896 = vmatpush2.msra.mxu0 0.0
        %1897 = vmatprep.subr.mxu0 0.0
        %1898 = vmatpush2.msra.mxu0 0.0
        %1899 = vmatprep.subr.mxu0 0.0
        %1900 = vmatpush2.msra.mxu0 0.0
        %1901 = vmatprep.subr.mxu0 0.0
        %1902 = vmatpush2.msra.mxu0 0.0
        %1903 = vmatprep.subr.mxu0 0.0
        %1904 = vmatpush2.msra.mxu0 0.0
        %1905 = vmatprep.subr.mxu0 0.0
        %1906 = vmatpush2.msra.mxu0 0.0
        %1907 = vmatprep.subr.mxu0 0.0
        %1908 = vmatpush2.msra.mxu0 0.0
        %1909 = vmatprep.subr.mxu0 0.0
        %1910 = vmatpush2.msra.mxu0 0.0
        %1911 = vmatprep.subr.mxu0 0.0
        %1912 = vmatpush2.msra.mxu0 0.0
        %1913 = vmatprep.subr.mxu0 0.0
        %1914 = vmatpush2.msra.mxu0 0.0
        %1915 = vmatprep.subr.mxu0 0.0
        %1916 = vmatpush2.msra.mxu0 0.0
        %1917 = vmatprep.subr.mxu0 0.0
        %1918 = vmatpush2.msra.mxu0 0.0
        %1919 = vmatprep.subr.mxu0 0.0
        %1920 = vmatpush2.msra.mxu0 0.0
        %1921 = vmatprep.subr.mxu0 0.0
        %1922 = vmatpush2.msra.mxu0 0.0
        %1923 = vmatprep.mubr.f32.mxu0 0.0
        %1924 = vmatmul.mubr.f32.gmra.mxu0 %v1852
        %v1925 = vpop.f32.mrf.mxu0
        %v1926 = vadd.f32 0.0, %v1925
        %v1927 = vpop.f32.mrf.mxu0
        %v1928 = vadd.f32 0.0, %v1927
        %1929 = vdwg.mxu0
        %1930 = vmatprep.subr.mxu0 0.0
        %1931 = vmatpush1.msra.mxu0 %v468
        %1932 = vmatprep.subr.mxu0 0.0
        %1933 = vmatpush1.msra.mxu0 %v465
        %1934 = vmatprep.subr.mxu0 0.0
        %1935 = vmatpush1.msra.mxu0 %v462
        %1936 = vmatprep.subr.mxu0 0.0
        %1937 = vmatpush1.msra.mxu0 %v459
        %1938 = vmatprep.subr.mxu0 0.0
        %1939 = vmatpush1.msra.mxu0 %v456
        %1940 = vmatprep.subr.mxu0 0.0
        %1941 = vmatpush1.msra.mxu0 %v453
        %1942 = vmatprep.subr.mxu0 0.0
        %1943 = vmatpush1.msra.mxu0 %v450
        %1944 = vmatprep.subr.mxu0 0.0
        %1945 = vmatpush1.msra.mxu0 %v447
        %1946 = vmatprep.subr.mxu0 0.0
        %1947 = vmatpush1.msra.mxu0 %v444
        %1948 = vmatprep.subr.mxu0 0.0
        %1949 = vmatpush1.msra.mxu0 %v441
        %1950 = vmatprep.subr.mxu0 0.0
        %1951 = vmatpush1.msra.mxu0 %v438
        %1952 = vmatprep.subr.mxu0 0.0
        %1953 = vmatpush1.msra.mxu0 %v435
        %1954 = vmatprep.subr.mxu0 0.0
        %1955 = vmatpush1.msra.mxu0 %v432
        %1956 = vmatprep.subr.mxu0 0.0
        %1957 = vmatpush1.msra.mxu0 %v429
        %1958 = vmatprep.subr.mxu0 0.0
        %1959 = vmatpush1.msra.mxu0 %v426
        %1960 = vmatprep.subr.mxu0 0.0
        %1961 = vmatpush1.msra.mxu0 %v423
        %1962 = vmatprep.subr.mxu0 0.0
        %1963 = vmatpush2.msra.mxu0 0.0
        %1964 = vmatprep.subr.mxu0 0.0
        %1965 = vmatpush2.msra.mxu0 0.0
        %1966 = vmatprep.subr.mxu0 0.0
        %1967 = vmatpush2.msra.mxu0 0.0
        %1968 = vmatprep.subr.mxu0 0.0
        %1969 = vmatpush2.msra.mxu0 0.0
        %1970 = vmatprep.subr.mxu0 0.0
        %1971 = vmatpush2.msra.mxu0 0.0
        %1972 = vmatprep.subr.mxu0 0.0
        %1973 = vmatpush2.msra.mxu0 0.0
        %1974 = vmatprep.subr.mxu0 0.0
        %1975 = vmatpush2.msra.mxu0 0.0
        %1976 = vmatprep.subr.mxu0 0.0
        %1977 = vmatpush2.msra.mxu0 0.0
        %1978 = vmatprep.subr.mxu0 0.0
        %1979 = vmatpush2.msra.mxu0 0.0
        %1980 = vmatprep.subr.mxu0 0.0
        %1981 = vmatpush2.msra.mxu0 0.0
        %1982 = vmatprep.subr.mxu0 0.0
        %1983 = vmatpush2.msra.mxu0 0.0
        %1984 = vmatprep.subr.mxu0 0.0
        %1985 = vmatpush2.msra.mxu0 0.0
        %1986 = vmatprep.subr.mxu0 0.0
        %1987 = vmatpush2.msra.mxu0 0.0
        %1988 = vmatprep.subr.mxu0 0.0
        %1989 = vmatpush2.msra.mxu0 0.0
        %1990 = vmatprep.subr.mxu0 0.0
        %1991 = vmatpush2.msra.mxu0 0.0
        %1992 = vmatprep.subr.mxu0 0.0
        %1993 = vmatpush2.msra.mxu0 0.0
        %1994 = vmatprep.mubr.f32.mxu0 0.0
        %1995 = vmatmul.mubr.f32.gmra.mxu0 %v1852
        %v1996 = vpop.f32.mrf.mxu0
        %v1997 = vadd.f32 0.0, %v1996
        %v1998 = vpop.f32.mrf.mxu0
        %1999 = vdwg.mxu0
        %v2000 = vadd.f32 %v1856, %v1926
        %v2001 = vadd.f32 %v1857, %v1928
        %v2002 = vxor.u32 %v2000, 2147483648
        %v2003 = vxor.u32 %v2001, 2147483648
        %v2004 = vmul.f32 %v2002, 1.442695
        %v2005 = vpow.pop %v2004
        %v2006 = vmul.f32 %v2003, 1.442695
        %v2007 = vpow.pop %v2006
        %v2008 = vadd.f32 %v2005, 1.0
        %v2009 = vadd.f32 %v2007, 1.0
        %v2010 = vrcp.pop %v2008
        %v2011 = vmul.f32 1.0, %v2010
        %v2012 = vrcp.pop %v2009
        %v2013 = vmul.f32 1.0, %v2012
        %v2014 = vadd.f32 %v1997, %v475
        %v2015 = vmul.f32 %v2011, %v2014
        %v2016 = vadd.f32 %v1858, %v2015
        %v2017 = vtanh.pop %v2016
        %v2018 = vsub.f32 %v1852, %v2017
        %v2019 = vmul.f32 %v2013, %v2018
        %v2020 = vadd.f32 %v2017, %v2019
        %s2021 = scalar_lea.vmem [#allocation11], 40
        %2022 = vst [vmem:[%s2021] sm:$0xff] %v2020
        %s2023 = scalar_lea.vmem [#allocation2], 144
        %v2024 = vld [vmem:[%s2023] sm:$0xff]
        %v2025 = vld [vmem:[%s2023 + $0x8] sm:$0xff]
        %v2026 = vld [vmem:[%s2023 + $0x10] sm:$0xff]
        %2027 = vmatprep.subr.mxu0 %v467
        %2028 = vmatpush1.msra.mxu0 %v466
        %2029 = vmatprep.subr.mxu0 %v464
        %2030 = vmatpush1.msra.mxu0 %v463
        %2031 = vmatprep.subr.mxu0 %v461
        %2032 = vmatpush1.msra.mxu0 %v460
        %2033 = vmatprep.subr.mxu0 %v458
        %2034 = vmatpush1.msra.mxu0 %v457
        %2035 = vmatprep.subr.mxu0 %v455
        %2036 = vmatpush1.msra.mxu0 %v454
        %2037 = vmatprep.subr.mxu0 %v452
        %2038 = vmatpush1.msra.mxu0 %v451
        %2039 = vmatprep.subr.mxu0 %v449
        %2040 = vmatpush1.msra.mxu0 %v448
        %2041 = vmatprep.subr.mxu0 %v446
        %2042 = vmatpush1.msra.mxu0 %v445
        %2043 = vmatprep.subr.mxu0 %v443
        %2044 = vmatpush1.msra.mxu0 %v442
        %2045 = vmatprep.subr.mxu0 %v440
        %2046 = vmatpush1.msra.mxu0 %v439
        %2047 = vmatprep.subr.mxu0 %v437
        %2048 = vmatpush1.msra.mxu0 %v436
        %2049 = vmatprep.subr.mxu0 %v434
        %2050 = vmatpush1.msra.mxu0 %v433
        %2051 = vmatprep.subr.mxu0 %v431
        %2052 = vmatpush1.msra.mxu0 %v430
        %2053 = vmatprep.subr.mxu0 %v428
        %2054 = vmatpush1.msra.mxu0 %v427
        %2055 = vmatprep.subr.mxu0 %v425
        %2056 = vmatpush1.msra.mxu0 %v424
        %2057 = vmatprep.subr.mxu0 %v422
        %2058 = vmatpush1.msra.mxu0 %v421
        %2059 = vmatprep.subr.mxu0 0.0
        %2060 = vmatpush2.msra.mxu0 0.0
        %2061 = vmatprep.subr.mxu0 0.0
        %2062 = vmatpush2.msra.mxu0 0.0
        %2063 = vmatprep.subr.mxu0 0.0
        %2064 = vmatpush2.msra.mxu0 0.0
        %2065 = vmatprep.subr.mxu0 0.0
        %2066 = vmatpush2.msra.mxu0 0.0
        %2067 = vmatprep.subr.mxu0 0.0
        %2068 = vmatpush2.msra.mxu0 0.0
        %2069 = vmatprep.subr.mxu0 0.0
        %2070 = vmatpush2.msra.mxu0 0.0
        %2071 = vmatprep.subr.mxu0 0.0
        %2072 = vmatpush2.msra.mxu0 0.0
        %2073 = vmatprep.subr.mxu0 0.0
        %2074 = vmatpush2.msra.mxu0 0.0
        %2075 = vmatprep.subr.mxu0 0.0
        %2076 = vmatpush2.msra.mxu0 0.0
        %2077 = vmatprep.subr.mxu0 0.0
        %2078 = vmatpush2.msra.mxu0 0.0
        %2079 = vmatprep.subr.mxu0 0.0
        %2080 = vmatpush2.msra.mxu0 0.0
        %2081 = vmatprep.subr.mxu0 0.0
        %2082 = vmatpush2.msra.mxu0 0.0
        %2083 = vmatprep.subr.mxu0 0.0
        %2084 = vmatpush2.msra.mxu0 0.0
        %2085 = vmatprep.subr.mxu0 0.0
        %2086 = vmatpush2.msra.mxu0 0.0
        %2087 = vmatprep.subr.mxu0 0.0
        %2088 = vmatpush2.msra.mxu0 0.0
        %2089 = vmatprep.subr.mxu0 0.0
        %2090 = vmatpush2.msra.mxu0 0.0
        %2091 = vmatprep.mubr.f32.mxu0 0.0
        %2092 = vmatmul.mubr.f32.gmra.mxu0 %v2020
        %v2093 = vpop.f32.mrf.mxu0
        %v2094 = vadd.f32 0.0, %v2093
        %v2095 = vpop.f32.mrf.mxu0
        %v2096 = vadd.f32 0.0, %v2095
        %2097 = vdwg.mxu0
        %2098 = vmatprep.subr.mxu0 0.0
        %2099 = vmatpush1.msra.mxu0 %v468
        %2100 = vmatprep.subr.mxu0 0.0
        %2101 = vmatpush1.msra.mxu0 %v465
        %2102 = vmatprep.subr.mxu0 0.0
        %2103 = vmatpush1.msra.mxu0 %v462
        %2104 = vmatprep.subr.mxu0 0.0
        %2105 = vmatpush1.msra.mxu0 %v459
        %2106 = vmatprep.subr.mxu0 0.0
        %2107 = vmatpush1.msra.mxu0 %v456
        %2108 = vmatprep.subr.mxu0 0.0
        %2109 = vmatpush1.msra.mxu0 %v453
        %2110 = vmatprep.subr.mxu0 0.0
        %2111 = vmatpush1.msra.mxu0 %v450
        %2112 = vmatprep.subr.mxu0 0.0
        %2113 = vmatpush1.msra.mxu0 %v447
        %2114 = vmatprep.subr.mxu0 0.0
        %2115 = vmatpush1.msra.mxu0 %v444
        %2116 = vmatprep.subr.mxu0 0.0
        %2117 = vmatpush1.msra.mxu0 %v441
        %2118 = vmatprep.subr.mxu0 0.0
        %2119 = vmatpush1.msra.mxu0 %v438
        %2120 = vmatprep.subr.mxu0 0.0
        %2121 = vmatpush1.msra.mxu0 %v435
        %2122 = vmatprep.subr.mxu0 0.0
        %2123 = vmatpush1.msra.mxu0 %v432
        %2124 = vmatprep.subr.mxu0 0.0
        %2125 = vmatpush1.msra.mxu0 %v429
        %2126 = vmatprep.subr.mxu0 0.0
        %2127 = vmatpush1.msra.mxu0 %v426
        %2128 = vmatprep.subr.mxu0 0.0
        %2129 = vmatpush1.msra.mxu0 %v423
        %2130 = vmatprep.subr.mxu0 0.0
        %2131 = vmatpush2.msra.mxu0 0.0
        %2132 = vmatprep.subr.mxu0 0.0
        %2133 = vmatpush2.msra.mxu0 0.0
        %2134 = vmatprep.subr.mxu0 0.0
        %2135 = vmatpush2.msra.mxu0 0.0
        %2136 = vmatprep.subr.mxu0 0.0
        %2137 = vmatpush2.msra.mxu0 0.0
        %2138 = vmatprep.subr.mxu0 0.0
        %2139 = vmatpush2.msra.mxu0 0.0
        %2140 = vmatprep.subr.mxu0 0.0
        %2141 = vmatpush2.msra.mxu0 0.0
        %2142 = vmatprep.subr.mxu0 0.0
        %2143 = vmatpush2.msra.mxu0 0.0
        %2144 = vmatprep.subr.mxu0 0.0
        %2145 = vmatpush2.msra.mxu0 0.0
        %2146 = vmatprep.subr.mxu0 0.0
        %2147 = vmatpush2.msra.mxu0 0.0
        %2148 = vmatprep.subr.mxu0 0.0
        %2149 = vmatpush2.msra.mxu0 0.0
        %2150 = vmatprep.subr.mxu0 0.0
        %2151 = vmatpush2.msra.mxu0 0.0
        %2152 = vmatprep.subr.mxu0 0.0
        %2153 = vmatpush2.msra.mxu0 0.0
        %2154 = vmatprep.subr.mxu0 0.0
        %2155 = vmatpush2.msra.mxu0 0.0
        %2156 = vmatprep.subr.mxu0 0.0
        %2157 = vmatpush2.msra.mxu0 0.0
        %2158 = vmatprep.subr.mxu0 0.0
        %2159 = vmatpush2.msra.mxu0 0.0
        %2160 = vmatprep.subr.mxu0 0.0
        %2161 = vmatpush2.msra.mxu0 0.0
        %2162 = vmatprep.mubr.f32.mxu0 0.0
        %2163 = vmatmul.mubr.f32.gmra.mxu0 %v2020
        %v2164 = vpop.f32.mrf.mxu0
        %v2165 = vadd.f32 0.0, %v2164
        %v2166 = vpop.f32.mrf.mxu0
        %2167 = vdwg.mxu0
        %v2168 = vadd.f32 %v2024, %v2094
        %v2169 = vadd.f32 %v2025, %v2096
        %v2170 = vxor.u32 %v2168, 2147483648
        %v2171 = vxor.u32 %v2169, 2147483648
        %v2172 = vmul.f32 %v2170, 1.442695
        %v2173 = vpow.pop %v2172
        %v2174 = vmul.f32 %v2171, 1.442695
        %v2175 = vpow.pop %v2174
        %v2176 = vadd.f32 %v2173, 1.0
        %v2177 = vadd.f32 %v2175, 1.0
        %v2178 = vrcp.pop %v2176
        %v2179 = vmul.f32 1.0, %v2178
        %v2180 = vrcp.pop %v2177
        %v2181 = vmul.f32 1.0, %v2180
        %v2182 = vadd.f32 %v2165, %v475
        %v2183 = vmul.f32 %v2179, %v2182
        %v2184 = vadd.f32 %v2026, %v2183
        %v2185 = vtanh.pop %v2184
        %v2186 = vsub.f32 %v2020, %v2185
        %v2187 = vmul.f32 %v2181, %v2186
        %v2188 = vadd.f32 %v2185, %v2187
        %s2189 = scalar_lea.vmem [#allocation11], 48
        %2190 = vst [vmem:[%s2189] sm:$0xff] %v2188
        %s2191 = scalar_lea.vmem [#allocation2], 168
        %v2192 = vld [vmem:[%s2191] sm:$0xff]
        %v2193 = vld [vmem:[%s2191 + $0x8] sm:$0xff]
        %v2194 = vld [vmem:[%s2191 + $0x10] sm:$0xff]
        %2195 = vmatprep.subr.mxu0 %v467
        %2196 = vmatpush1.msra.mxu0 %v466
        %2197 = vmatprep.subr.mxu0 %v464
        %2198 = vmatpush1.msra.mxu0 %v463
        %2199 = vmatprep.subr.mxu0 %v461
        %2200 = vmatpush1.msra.mxu0 %v460
        %2201 = vmatprep.subr.mxu0 %v458
        %2202 = vmatpush1.msra.mxu0 %v457
        %2203 = vmatprep.subr.mxu0 %v455
        %2204 = vmatpush1.msra.mxu0 %v454
        %2205 = vmatprep.subr.mxu0 %v452
        %2206 = vmatpush1.msra.mxu0 %v451
        %2207 = vmatprep.subr.mxu0 %v449
        %2208 = vmatpush1.msra.mxu0 %v448
        %2209 = vmatprep.subr.mxu0 %v446
        %2210 = vmatpush1.msra.mxu0 %v445
        %2211 = vmatprep.subr.mxu0 %v443
        %2212 = vmatpush1.msra.mxu0 %v442
        %2213 = vmatprep.subr.mxu0 %v440
        %2214 = vmatpush1.msra.mxu0 %v439
        %2215 = vmatprep.subr.mxu0 %v437
        %2216 = vmatpush1.msra.mxu0 %v436
        %2217 = vmatprep.subr.mxu0 %v434
        %2218 = vmatpush1.msra.mxu0 %v433
        %2219 = vmatprep.subr.mxu0 %v431
        %2220 = vmatpush1.msra.mxu0 %v430
        %2221 = vmatprep.subr.mxu0 %v428
        %2222 = vmatpush1.msra.mxu0 %v427
        %2223 = vmatprep.subr.mxu0 %v425
        %2224 = vmatpush1.msra.mxu0 %v424
        %2225 = vmatprep.subr.mxu0 %v422
        %2226 = vmatpush1.msra.mxu0 %v421
        %2227 = vmatprep.subr.mxu0 0.0
        %2228 = vmatpush2.msra.mxu0 0.0
        %2229 = vmatprep.subr.mxu0 0.0
        %2230 = vmatpush2.msra.mxu0 0.0
        %2231 = vmatprep.subr.mxu0 0.0
        %2232 = vmatpush2.msra.mxu0 0.0
        %2233 = vmatprep.subr.mxu0 0.0
        %2234 = vmatpush2.msra.mxu0 0.0
        %2235 = vmatprep.subr.mxu0 0.0
        %2236 = vmatpush2.msra.mxu0 0.0
        %2237 = vmatprep.subr.mxu0 0.0
        %2238 = vmatpush2.msra.mxu0 0.0
        %2239 = vmatprep.subr.mxu0 0.0
        %2240 = vmatpush2.msra.mxu0 0.0
        %2241 = vmatprep.subr.mxu0 0.0
        %2242 = vmatpush2.msra.mxu0 0.0
        %2243 = vmatprep.subr.mxu0 0.0
        %2244 = vmatpush2.msra.mxu0 0.0
        %2245 = vmatprep.subr.mxu0 0.0
        %2246 = vmatpush2.msra.mxu0 0.0
        %2247 = vmatprep.subr.mxu0 0.0
        %2248 = vmatpush2.msra.mxu0 0.0
        %2249 = vmatprep.subr.mxu0 0.0
        %2250 = vmatpush2.msra.mxu0 0.0
        %2251 = vmatprep.subr.mxu0 0.0
        %2252 = vmatpush2.msra.mxu0 0.0
        %2253 = vmatprep.subr.mxu0 0.0
        %2254 = vmatpush2.msra.mxu0 0.0
        %2255 = vmatprep.subr.mxu0 0.0
        %2256 = vmatpush2.msra.mxu0 0.0
        %2257 = vmatprep.subr.mxu0 0.0
        %2258 = vmatpush2.msra.mxu0 0.0
        %2259 = vmatprep.mubr.f32.mxu0 0.0
        %2260 = vmatmul.mubr.f32.gmra.mxu0 %v2188
        %v2261 = vpop.f32.mrf.mxu0
        %v2262 = vadd.f32 0.0, %v2261
        %v2263 = vpop.f32.mrf.mxu0
        %v2264 = vadd.f32 0.0, %v2263
        %2265 = vdwg.mxu0
        %2266 = vmatprep.subr.mxu0 0.0
        %2267 = vmatpush1.msra.mxu0 %v468
        %2268 = vmatprep.subr.mxu0 0.0
        %2269 = vmatpush1.msra.mxu0 %v465
        %2270 = vmatprep.subr.mxu0 0.0
        %2271 = vmatpush1.msra.mxu0 %v462
        %2272 = vmatprep.subr.mxu0 0.0
        %2273 = vmatpush1.msra.mxu0 %v459
        %2274 = vmatprep.subr.mxu0 0.0
        %2275 = vmatpush1.msra.mxu0 %v456
        %2276 = vmatprep.subr.mxu0 0.0
        %2277 = vmatpush1.msra.mxu0 %v453
        %2278 = vmatprep.subr.mxu0 0.0
        %2279 = vmatpush1.msra.mxu0 %v450
        %2280 = vmatprep.subr.mxu0 0.0
        %2281 = vmatpush1.msra.mxu0 %v447
        %2282 = vmatprep.subr.mxu0 0.0
        %2283 = vmatpush1.msra.mxu0 %v444
        %2284 = vmatprep.subr.mxu0 0.0
        %2285 = vmatpush1.msra.mxu0 %v441
        %2286 = vmatprep.subr.mxu0 0.0
        %2287 = vmatpush1.msra.mxu0 %v438
        %2288 = vmatprep.subr.mxu0 0.0
        %2289 = vmatpush1.msra.mxu0 %v435
        %2290 = vmatprep.subr.mxu0 0.0
        %2291 = vmatpush1.msra.mxu0 %v432
        %2292 = vmatprep.subr.mxu0 0.0
        %2293 = vmatpush1.msra.mxu0 %v429
        %2294 = vmatprep.subr.mxu0 0.0
        %2295 = vmatpush1.msra.mxu0 %v426
        %2296 = vmatprep.subr.mxu0 0.0
        %2297 = vmatpush1.msra.mxu0 %v423
        %2298 = vmatprep.subr.mxu0 0.0
        %2299 = vmatpush2.msra.mxu0 0.0
        %2300 = vmatprep.subr.mxu0 0.0
        %2301 = vmatpush2.msra.mxu0 0.0
        %2302 = vmatprep.subr.mxu0 0.0
        %2303 = vmatpush2.msra.mxu0 0.0
        %2304 = vmatprep.subr.mxu0 0.0
        %2305 = vmatpush2.msra.mxu0 0.0
        %2306 = vmatprep.subr.mxu0 0.0
        %2307 = vmatpush2.msra.mxu0 0.0
        %2308 = vmatprep.subr.mxu0 0.0
        %2309 = vmatpush2.msra.mxu0 0.0
        %2310 = vmatprep.subr.mxu0 0.0
        %2311 = vmatpush2.msra.mxu0 0.0
        %2312 = vmatprep.subr.mxu0 0.0
        %2313 = vmatpush2.msra.mxu0 0.0
        %2314 = vmatprep.subr.mxu0 0.0
        %2315 = vmatpush2.msra.mxu0 0.0
        %2316 = vmatprep.subr.mxu0 0.0
        %2317 = vmatpush2.msra.mxu0 0.0
        %2318 = vmatprep.subr.mxu0 0.0
        %2319 = vmatpush2.msra.mxu0 0.0
        %2320 = vmatprep.subr.mxu0 0.0
        %2321 = vmatpush2.msra.mxu0 0.0
        %2322 = vmatprep.subr.mxu0 0.0
        %2323 = vmatpush2.msra.mxu0 0.0
        %2324 = vmatprep.subr.mxu0 0.0
        %2325 = vmatpush2.msra.mxu0 0.0
        %2326 = vmatprep.subr.mxu0 0.0
        %2327 = vmatpush2.msra.mxu0 0.0
        %2328 = vmatprep.subr.mxu0 0.0
        %2329 = vmatpush2.msra.mxu0 0.0
        %2330 = vmatprep.mubr.f32.mxu0 0.0
        %2331 = vmatmul.mubr.f32.gmra.mxu0 %v2188
        %v2332 = vpop.f32.mrf.mxu0
        %v2333 = vadd.f32 0.0, %v2332
        %v2334 = vpop.f32.mrf.mxu0
        %2335 = vdwg.mxu0
        %v2336 = vadd.f32 %v2192, %v2262
        %v2337 = vadd.f32 %v2193, %v2264
        %v2338 = vxor.u32 %v2336, 2147483648
        %v2339 = vxor.u32 %v2337, 2147483648
        %v2340 = vmul.f32 %v2338, 1.442695
        %v2341 = vpow.pop %v2340
        %v2342 = vmul.f32 %v2339, 1.442695
        %v2343 = vpow.pop %v2342
        %v2344 = vadd.f32 %v2341, 1.0
        %v2345 = vadd.f32 %v2343, 1.0
        %v2346 = vrcp.pop %v2344
        %v2347 = vmul.f32 1.0, %v2346
        %v2348 = vrcp.pop %v2345
        %v2349 = vmul.f32 1.0, %v2348
        %v2350 = vadd.f32 %v2333, %v475
        %v2351 = vmul.f32 %v2347, %v2350
        %v2352 = vadd.f32 %v2194, %v2351
        %v2353 = vtanh.pop %v2352
        %v2354 = vsub.f32 %v2188, %v2353
        %v2355 = vmul.f32 %v2349, %v2354
        %v2356 = vadd.f32 %v2353, %v2355
        %s2357 = scalar_lea.vmem [#allocation11], 56
        %2358 = vst [vmem:[%s2357] sm:$0xff] %v2356
        %2359 = vst [vmem:[%s369] sm:$0xff] %v2356
        %s2360 = sand.u32 %s183, 1
        %s2361 = scalar_lea.sflag [#allocation13], %s2360
        %s2362 = sand.u32 %s183, 1
        %s2363 = smul.addr %s2362, 8
        %s2364 = scalar_lea.vmem [#allocation12], %s2363
        // Predicated region
        $region65: #{tpu_custom_call.1} parent=39 // pred_check
          %p2365 = pneg %p167
        $region66: #{tpu_custom_call.1} parent=39 // pred_check_branch
          %2367 = sbr.rel (%p2365) target = $region68
        $region67: #{tpu_custom_call.1} parent=39 // pred_region
          %s2369 = ssub.s32 1024, 1024
          %2370 = vsyncadd [#allocation5], %s2369
          %s2371 = sshll.u32 [#allocation11], 4
          %s2372 = int_to_ptr.vmem [resolvable:$true] %s2371
          %2377 = dma.vmem_to_hbm [thread:$0]  %s2372, 1024, %s5, [#allocation5], 128, 128, 8
        $region68: #{tpu_custom_call.1} parent=39 // pred_fallthru
          _
        // Predicated region
        $region69: #{tpu_custom_call.1} parent=39 // pred_check
          %p2378 = pneg %p193
        $region70: #{tpu_custom_call.1} parent=39 // pred_check_branch
          %2380 = sbr.rel (%p2378) target = $region72
        $region71: #{tpu_custom_call.1} parent=39 // pred_region
          %s2382 = ssub.s32 128, 128
          %2383 = vsyncadd %s2361, %s2382
          %s2384 = smul.addr %s29, 128
          %s2385 = scalar_lea.hbm %s6, %s2384
          %s2387 = sshll.u32 %s2364, 4
          %s2388 = int_to_ptr.vmem [resolvable:$true] %s2387
          %2390 = dma.vmem_to_hbm [thread:$0]  %s2388, 128, %s2385, %s2361
        $region72: #{tpu_custom_call.1} parent=39 // pred_fallthru
          _
        // Predicated region
        $region73: #{tpu_custom_call.1} parent=39 // pred_check
          %p2391 = pneg %p167
        $region74: #{tpu_custom_call.1} parent=39 // pred_check_branch
          %2393 = sbr.rel (%p2391) target = $region76
        $region75: #{tpu_custom_call.1} parent=39 // pred_region
          %2394 = dma.done [#allocation5], 1024
        $region76: #{tpu_custom_call.1} parent=39 // pred_fallthru
          _
      $region40: #{tpu_custom_call.1} parent=5 // pred_fallthru
        _
      %p2395 = scmp.le.s32.totalorder 2, %s24
      // Predicated region
      $region77: #{tpu_custom_call.1} parent=5 // pred_check
        %p2396 = pneg %p2395
      $region78: #{tpu_custom_call.1} parent=5 // pred_check_branch
        %2398 = sbr.rel (%p2396) target = $region80
      $region79: #{tpu_custom_call.1} parent=5 // pred_region
        %s2399 = ssub.s32 %s24, 2
        // Predicated region
        $region81: #{tpu_custom_call.1} parent=79 // pred_check
          %p2400 = pneg %p199
        $region82: #{tpu_custom_call.1} parent=79 // pred_check_branch
          %2402 = sbr.rel (%p2400) target = $region84
        $region83: #{tpu_custom_call.1} parent=79 // pred_region
          %s2403 = sand.u32 %s184, 1
          %s2404 = scalar_lea.sflag [#allocation13], %s2403
          %s2405 = sand.u32 %s184, 1
          %s2406 = smul.addr %s2405, 8
          %s2407 = scalar_lea.vmem [#allocation12], %s2406
          %2408 = dma.done %s2404, 128
        $region84: #{tpu_custom_call.1} parent=79 // pred_fallthru
          _
      $region80: #{tpu_custom_call.1} parent=5 // pred_fallthru
        _
    $region6: #{tpu_custom_call.1} parent=1 // loop_footer
      %s28 = sadd.s32 1, %s24
    $region7: #{tpu_custom_call.1} parent=1 // loop_footer_branch
      %23 = sbr.rel target = $region3
    $region8: #{tpu_custom_call.1} parent=1 // loop_exit
      _
    %2409 = vsyncpa [#allocation4], 1
    %s2410 = scalar_lea.sflag [#allocation4], 1
    %2411 = vsyncpa %s2410, 1
    %2412 = vsyncpa [#allocation7], 1
    %s2413 = scalar_lea.sflag [#allocation7], 1
    %2414 = vsyncpa %s2413, 1
    %2415 = vsyncpa [#allocation10], 1
    %s2416 = scalar_lea.sflag [#allocation10], 1
    %2417 = vsyncpa %s2416, 1
    %2418 = vsyncpa [#allocation5], 1
    %s2419 = scalar_lea.sflag [#allocation5], 1
    %2420 = vsyncpa %s2419, 1
    %2421 = vsyncpa [#allocation13], 1
    %s2422 = scalar_lea.sflag [#allocation13], 1
    %2423 = vsyncpa %s2422, 1

</llo_original>
